<compile_context>
chip_gen: v7x
topology: tpu7x:2x2x1
jax: 0.10.0
libtpu: 0.0.40
codegen_flags: <defaults>
</compile_context>

<pallas_src>
import jax
import jax.numpy as jnp
from jax import lax
from jax.experimental import pallas as pl
from jax.experimental.pallas import tpu as pltpu


# --------------------------------------------------------------------------
# Fused kernel: (ConvTranspose2x2 ∘ Conv3x3+BN+ReLU) -> (Conv3x3+BN+ReLU)
# --------------------------------------------------------------------------
def _up_fused_kernel(xpad_ref, w1c_ref, sh1v_ref, w2b_ref, sh2_ref,
                     out_ref, s2_ref):
    f32 = jnp.float32
    bf16 = jnp.bfloat16
    B = xpad_ref.shape[0]
    H = xpad_ref.shape[1] - 2
    K = xpad_ref.shape[2]
    Nl = w2b_ref.shape[1]
    M = B * H

    def dot(a, b):
        return jnp.dot(a, b, preferred_element_type=f32)

    # ---- Stage 1: upsample ∘ conv1 ∘ BN ∘ ReLU (pre-composed on host) -------
    # xpad rows: [zero, x[0..H-1], zero] per image; slices give prev/cur/next.
    xprev = xpad_ref[:, 0:H, :].astype(bf16).reshape(M, K)
    xcur = xpad_ref[:, 1:H + 1, :].astype(bf16).reshape(M, K)
    xnext = xpad_ref[:, 2:H + 2, :].astype(bf16).reshape(M, K)

    # per-row boundary masks for the b_up bias image (top/bottom tap missing)
    rim = lax.broadcasted_iota(jnp.int32, (B, H, 1), 1).reshape(M, 1)
    not_first = (rim > 0).astype(f32)
    not_last = (rim < H - 1).astype(f32)

    # w1c: [E_prev, E_cur, O_cur, O_next]; sh1v: [ev_base, od_base, T, Bo]
    ev1 = dot(xprev, w1c_ref[0]) + dot(xcur, w1c_ref[1])
    ev1 = jnp.maximum(ev1 + sh1v_ref[0:1, :] + not_first * sh1v_ref[2:3, :], 0.0)
    od1 = dot(xcur, w1c_ref[2]) + dot(xnext, w1c_ref[3])
    od1 = jnp.maximum(od1 + sh1v_ref[1:2, :] + not_last * sh1v_ref[3:4, :], 0.0)

    # ---- stage conv1 rows into a phase-split, row-padded scratch -------------
    # s2[phi, b, a, :] holds zero-padded conv1 row 2a + phi (padded rows 0..2H+1).
    s2_ref[1, :, 0:H, :] = ev1.reshape(B, H, Nl)        # image row 2a   -> padded 2a+1
    s2_ref[0, :, 1:H + 1, :] = od1.reshape(B, H, Nl)    # image row 2a+1 -> padded 2a+2
    zrow = jnp.zeros((B, 1, Nl), f32)
    s2_ref[0, :, 0:1, :] = zrow                         # padded row 0     (top pad)
    s2_ref[1, :, H:H + 1, :] = zrow                     # padded row 2H+1  (bottom pad)
    # NOTE: pad rows are rewritten every grid step on purpose: guarding with
    # program_id(0)==0 would be wrong if the "parallel" axis is split across cores.

    # ---- Stage 2: 3x3 conv (pad=1) + folded BN + ReLU as banded row matmuls --
    p00 = s2_ref[0, :, 0:H, :].astype(bf16).reshape(M, Nl)       # padded rows 2a
    p10 = s2_ref[1, :, 0:H, :].astype(bf16).reshape(M, Nl)       # padded rows 2a+1
    p01 = s2_ref[0, :, 1:H + 1, :].astype(bf16).reshape(M, Nl)   # padded rows 2a+2
    p11 = s2_ref[1, :, 1:H + 1, :].astype(bf16).reshape(M, Nl)   # padded rows 2a+3

    w0, w1, w2 = w2b_ref[0], w2b_ref[1], w2b_ref[2]
    sh2 = sh2_ref[...]
    ev2 = jnp.maximum(dot(p00, w0) + dot(p10, w1) + dot(p01, w2) + sh2, 0.0)
    od2 = jnp.maximum(dot(p10, w0) + dot(p01, w1) + dot(p11, w2) + sh2, 0.0)

    # lane-dense interleaved store: lanes [0:Nl) = row 2a, [Nl:2Nl) = row 2a+1
    out_ref[:, :, 0:Nl] = ev2.reshape(B, H, Nl)
    out_ref[:, :, Nl:2 * Nl] = od2.reshape(B, H, Nl)


# --------------------------------------------------------------------------
# Host-side weight preparation
# --------------------------------------------------------------------------
def _stage1_composites(w_up, b_up, w1, b1, s1, sh1, W):
    """Compose ConvTranspose2d(k=2,s=2) with Conv3x3(pad=1) + BN scale fold.

    Returns:
      w1c  (4, W*Cin, 2W*Cout): [E_prev, E_cur, O_cur, O_next]
      sh1v (4, 2W*Cout):        [even base, odd base, top-tap bias T, bottom-tap bias Bo]
    """
    f32 = jnp.float32
    Cin = w_up.shape[0]
    Cout = w1.shape[-1]
    Wp = 2 * W
    ws1 = (w1 * s1[None, None, None, :]).astype(f32)          # (3,3,Cin,Cout)

    dj = jnp.arange(3)[:, None, None, None]
    jj = jnp.arange(W)[None, :, None, None]
    kj = jnp.arange(2)[None, None, :, None]
    qq = jnp.arange(Wp)[None, None, None, :]
    # ind[dj, j, kj, q] = 1 iff upsampled column q + dj - 1 == 2j + kj (width pad implicit)
    ind = (qq == 2 * jj + kj + 1 - dj).astype(f32)             # (3, W, 2, Wp)

    def comp(di, ki):
        m = jnp.einsum("djkq,abk,dbf->jaqf", ind, w_up[:, :, ki, :], ws1[di])
        return m.reshape(W * Cin, Wp * Cout)

    e_prev = comp(0, 1)
    e_cur = comp(1, 0) + comp(2, 1)
    o_cur = comp(0, 0) + comp(1, 1)
    o_next = comp(2, 0)
    w1c = jnp.stack([e_prev, e_cur, o_cur, o_next], axis=0)

    # b_up bias-image contribution through each row tap di (column pads honored)
    q = jnp.arange(Wp)[None, :]
    d = jnp.arange(3)[:, None]
    colvalid = ((q + d - 1 >= 0) & (q + d - 1 < Wp)).astype(f32)   # (3, Wp)
    bt = jnp.einsum("dq,edbf,b->eqf", colvalid, ws1, b_up).reshape(3, Wp * Cout)

    base = jnp.tile(b1 * s1 + sh1, Wp)[None, :]                    # (1, Wp*Cout)
    sh_even = base + bt[1:2] + bt[2:3]       # top tap (T) added only when a >= 1
    sh_odd = base + bt[0:1] + bt[1:2]        # bottom tap (Bo) added only when a <= H-2
    sh1v = jnp.concatenate([sh_even, sh_odd, bt[0:1], bt[2:3]], axis=0)
    return w1c, sh1v


def _conv_band_mats(w, scale, Wp):
    """w: (3,3,Cin,Cout) HWIO, scale: (Cout,). Returns (3, Wp*Cin, Wp*Cout)."""
    f32 = jnp.float32
    Cin, Cout = w.shape[2], w.shape[3]
    dj = jnp.arange(3)
    qi = jnp.arange(Wp)
    qo = jnp.arange(Wp)
    # ind[dj, qi, qo] = 1 iff qi == qo + dj - 1 (implicit zero width-padding)
    ind = (qi[None, :, None] == (qo[None, None, :] + dj[:, None, None] - 1)).astype(f32)
    ws = w * scale[None, None, None, :]
    mats = [jnp.einsum("dio,dcf->icof", ind, ws[di]).reshape(Wp * Cin, Wp * Cout)
            for di in range(3)]
    return jnp.stack(mats, axis=0)


# --------------------------------------------------------------------------
# Wrapper
# --------------------------------------------------------------------------
def up_forward(params, x1_nchw, x2_nchw):
    f32 = jnp.float32
    bf16 = jnp.bfloat16
    x = jnp.concatenate([x1_nchw, x2_nchw], axis=1)        # torch.cat(dim=1), NCHW
    N, Cin, H, W = x.shape
    Cout = params["w1"].shape[-1]
    Wp = 2 * W
    K = W * Cin
    Nl = Wp * Cout

    # lane-density guard: full-128-lane loads/stores and K,N >= 128 matmuls
    assert K % 128 == 0 and Nl % 128 == 0, (
        "W*Cin and 2W*Cout must be multiples of 128 (pad channels on the host)")
    # TODO(synk): host-side channel padding for arbitrary Cin/Cout.

    # row lane-dense layout (lane = w*Cin + ci) with one zero row above/below
    xr = jnp.transpose(x, (0, 2, 3, 1)).reshape(N, H, K)
    xpad = jnp.pad(xr, ((0, 0), (1, 1), (0, 0)))

    w1c, sh1v = _stage1_composites(params["w_up"], params["b_up"], params["w1"],
                                   params["b1"], params["bn1_scale"],
                                   params["bn1_shift"], W)
    w2b = _conv_band_mats(params["w2"], params["bn2_scale"], Wp)
    sh2 = jnp.tile(params["b2"] * params["bn2_scale"] + params["bn2_shift"], Wp)[None, :]

    w1c = w1c.astype(bf16)                 # bf16 MXU operands, f32 accumulation
    w2b = w2b.astype(bf16)
    sh1v = sh1v.astype(f32)
    sh2 = sh2.astype(f32)

    # batch blocking: collapse (B_blk, H) into one matmul M dimension (target >=128)
    target = max(1, 128 // H)
    B_blk = 1
    for d in range(1, N + 1):
        if N % d == 0 and d <= target:
            B_blk = d
    grid = (N // B_blk,)

    flops = N * (8 * H * K * Nl + 12 * H * Nl * Nl)
    bytes_accessed = (xpad.size * 4 + w1c.size * 2 + w2b.size * 2
                      + (sh1v.size + sh2.size) * 4 + N * H * 2 * Nl * 4)
    # VMEM budget (input/output/weight blocks double-buffered by default) + slack
    vmem_need = (2 * (B_blk * (H + 2) * K * 4 + B_blk * H * 2 * Nl * 4
                      + w1c.size * 2 + w2b.size * 2 + (sh1v.size + sh2.size) * 4)
                 + 2 * B_blk * (H + 1) * Nl * 4 + (4 << 20))
    vmem_limit = int(min(56 * 2**20, max(vmem_need, 16 * 2**20)))

    out = pl.pallas_call(
        _up_fused_kernel,
        out_shape=jax.ShapeDtypeStruct((N, H, 2 * Nl), f32),
        grid=grid,
        in_specs=[
            pl.BlockSpec((B_blk, H + 2, K), lambda n: (n, 0, 0)),
            pl.BlockSpec((4, K, Nl), lambda n: (0, 0, 0)),
            pl.BlockSpec((4, Nl), lambda n: (0, 0)),
            pl.BlockSpec((3, Nl, Nl), lambda n: (0, 0, 0)),
            pl.BlockSpec((1, Nl), lambda n: (0, 0)),
        ],
        out_specs=pl.BlockSpec((B_blk, H, 2 * Nl), lambda n: (n, 0, 0)),
        scratch_shapes=[
            pltpu.VMEM((2, B_blk, H + 1, Nl), f32),   # phase-split padded conv1 output
        ],
        compiler_params=pltpu.CompilerParams(
            dimension_semantics=("parallel",),
            vmem_limit_bytes=vmem_limit),
        cost_estimate=pl.CostEstimate(flops=flops, transcendentals=0,
                                      bytes_accessed=bytes_accessed),
    )(xpad, w1c, sh1v, w2b, sh2)

    # lanes are [parity, qo, f]; merging (H, 2) -> 2H is a pure reshape (free),
    # then a single NHWC -> NCHW transpose to match the PyTorch layout.
    out = out.reshape(N, 2 * H, Wp, Cout)
    return jnp.transpose(out, (0, 3, 1, 2))


# --------------------------------------------------------------------------
# Parameters (deterministic, synthetic) and a pure-JAX reference
# --------------------------------------------------------------------------
def init_params(key, in_channels, out_channels):
    ks = jax.random.split(key, 6)
    eps = 1e-5
    p = {}
    # nn.ConvTranspose2d(in, in, kernel_size=2, stride=2), PyTorch (Cin, Cout, kH, kW)
    p["w_up"] = jax.random.normal(ks[0], (in_channels, in_channels, 2, 2),
                                  jnp.float32) / jnp.sqrt(4.0 * in_channels)
    p["b_up"] = 0.01 * jax.random.normal(ks[1], (in_channels,), jnp.float32)
    # DoubleConv: Conv3x3(in->out)+BN+ReLU, Conv3x3(out->out)+BN+ReLU  (HWIO weights)
    p["w1"] = jax.random.normal(ks[2], (3, 3, in_channels, out_channels),
                                jnp.float32) / jnp.sqrt(9.0 * in_channels)
    p["b1"] = 0.01 * jax.random.normal(ks[3], (out_channels,), jnp.float32)
    p["w2"] = jax.random.normal(ks[4], (3, 3, out_channels, out_channels),
                                jnp.float32) / jnp.sqrt(9.0 * out_channels)
    p["b2"] = 0.01 * jax.random.normal(ks[5], (out_channels,), jnp.float32)
    # BatchNorm2d eval-mode with fresh stats
    bn_scale = 1.0 / jnp.sqrt(1.0 + eps)
    p["bn1_scale"] = jnp.full((out_channels,), bn_scale, jnp.float32)
    p["bn1_shift"] = jnp.zeros((out_channels,), jnp.float32)
    p["bn2_scale"] = jnp.full((out_channels,), bn_scale, jnp.float32)
    p["bn2_shift"] = jnp.zeros((out_channels,), jnp.float32)
    return p


def ref_forward(params, x1, x2):
    x = jnp.concatenate([x1, x2], axis=1)
    x = jnp.transpose(x, (0, 2, 3, 1))
    N, H, W, C = x.shape
    y = jnp.einsum("nhwc,coij->nhiwjo", x, params["w_up"])
    y = y.reshape(N, 2 * H, 2 * W, C) + params["b_up"]

    def cbr(z, w, b, s, sh):
        z = jax.lax.conv_general_dilated(
            z, w, (1, 1), "SAME", dimension_numbers=("NHWC", "HWIO", "NHWC"))
        return jnp.maximum((z + b) * s + sh, 0.0)

    y = cbr(y, params["w1"], params["b1"], params["bn1_scale"], params["bn1_shift"])
    y = cbr(y, params["w2"], params["b2"], params["bn2_scale"], params["bn2_shift"])
    return jnp.transpose(y, (0, 3, 1, 2))


if __name__ == "__main__":
    key = jax.random.PRNGKey(0)
    k1, k2, kp = jax.random.split(key, 3)

    in_channels, out_channels = 8, 8           # concat of two 4-channel inputs
    N, H, W = 2, 16, 16
    x1 = jax.random.normal(k1, (N, in_channels // 2, H, W), jnp.float32)
    x2 = jax.random.normal(k2, (N, in_channels // 2, H, W), jnp.float32)

    params = init_params(kp, in_channels, out_channels)

    out = jax.jit(up_forward)(params, x1, x2)
    out = jax.block_until_ready(out)

    assert out.shape == (N, out_channels, 2 * H, 2 * W), out.shape
    ref = ref_forward(params, x1, x2)
    max_err = float(jnp.max(jnp.abs(out - ref)))
    # error budget is bf16-rounding dominated (MXU operands are bfloat16)
    assert max_err < 3e-2, f"max abs error {max_err}"

    print("KERNEL_OK")
</pallas_src>

<mosaic_0001>
module attributes {stable_mosaic.version = 11 : i64} {
  func.func @_up_fused_kernel(%arg0: i32, %arg1: memref<2x18x128xf32, #tpu.memory_space<vmem>>, %arg2: memref<4x128x256xbf16, #tpu.memory_space<vmem>>, %arg3: memref<4x256xf32, #tpu.memory_space<vmem>>, %arg4: memref<3x256x256xbf16, #tpu.memory_space<vmem>>, %arg5: memref<1x256xf32, #tpu.memory_space<vmem>>, %arg6: memref<2x16x512xf32, #tpu.memory_space<vmem>>, %arg7: memref<2x2x17x256xf32, #tpu.memory_space<vmem>>) attributes {dimension_semantics = [#tpu.dimension_semantics<parallel>], iteration_bounds = array<i64: 1>, scalar_prefetch = 0 : i64, scratch_operands = 1 : i64, tpu.core_type = #tpu.core_type<tc>, window_params = [{transform_indices = @transform_0, window_bounds = array<i64: 2, 18, 128>}, {pipeline_mode = #tpu.pipeline_mode<synchronous>, transform_indices = @transform_1, window_bounds = array<i64: 4, 128, 256>}, {pipeline_mode = #tpu.pipeline_mode<synchronous>, transform_indices = @transform_2, window_bounds = array<i64: 4, 256>}, {pipeline_mode = #tpu.pipeline_mode<synchronous>, transform_indices = @transform_3, window_bounds = array<i64: 3, 256, 256>}, {pipeline_mode = #tpu.pipeline_mode<synchronous>, transform_indices = @transform_4, window_bounds = array<i64: 1, 256>}, {transform_indices = @transform_5, window_bounds = array<i64: 2, 16, 512>}]} {
    %c0 = arith.constant 0 : index
    %c0_0 = arith.constant 0 : index
    %c0_1 = arith.constant 0 : index
    %0 = vector.load %arg1[%c0, %c0_0, %c0_1] : memref<2x18x128xf32, #tpu.memory_space<vmem>>, vector<2x16x128xf32>
    %1 = arith.truncf %0 : vector<2x16x128xf32> to vector<2x16x128xbf16>
    %2 = vector.shape_cast %1 : vector<2x16x128xbf16> to vector<32x128xbf16>
    %c0_2 = arith.constant 0 : index
    %c1 = arith.constant 1 : index
    %c0_3 = arith.constant 0 : index
    %3 = vector.load %arg1[%c0_2, %c1, %c0_3] : memref<2x18x128xf32, #tpu.memory_space<vmem>>, vector<2x16x128xf32>
    %4 = arith.truncf %3 : vector<2x16x128xf32> to vector<2x16x128xbf16>
    %5 = vector.shape_cast %4 : vector<2x16x128xbf16> to vector<32x128xbf16>
    %c0_4 = arith.constant 0 : index
    %c2 = arith.constant 2 : index
    %c0_5 = arith.constant 0 : index
    %6 = vector.load %arg1[%c0_4, %c2, %c0_5] : memref<2x18x128xf32, #tpu.memory_space<vmem>>, vector<2x16x128xf32>
    %7 = arith.truncf %6 : vector<2x16x128xf32> to vector<2x16x128xbf16>
    %8 = vector.shape_cast %7 : vector<2x16x128xbf16> to vector<32x128xbf16>
    %9 = tpu.iota {dimensions = array<i32: 1>} : vector<2x16x1xi32>
    %10 = vector.shape_cast %9 : vector<2x16x1xi32> to vector<32x1xi32>
    %c0_i32 = arith.constant 0 : i32
    %11 = vector.broadcast %c0_i32 : i32 to vector<32x1xi32>
    %12 = arith.cmpi sgt, %10, %11 : vector<32x1xi32>
    %13 = arith.extui %12 : vector<32x1xi1> to vector<32x1xi32>
    %14 = arith.sitofp %13 : vector<32x1xi32> to vector<32x1xf32>
    %c15_i32 = arith.constant 15 : i32
    %15 = vector.broadcast %c15_i32 : i32 to vector<32x1xi32>
    %16 = arith.cmpi slt, %10, %15 : vector<32x1xi32>
    %17 = arith.extui %16 : vector<32x1xi1> to vector<32x1xi32>
    %18 = arith.sitofp %17 : vector<32x1xi32> to vector<32x1xf32>
    %c0_6 = arith.constant 0 : index
    %c0_7 = arith.constant 0 : index
    %c0_8 = arith.constant 0 : index
    %19 = vector.load %arg2[%c0_6, %c0_7, %c0_8] : memref<4x128x256xbf16, #tpu.memory_space<vmem>>, vector<1x128x256xbf16>
    %20 = vector.shape_cast %19 : vector<1x128x256xbf16> to vector<128x256xbf16>
    %cst = arith.constant dense<0.000000e+00> : vector<32x256xf32>
    %21 = tpu.matmul %2, %20, %cst {dimension_numbers = #tpu.dot_dimension_numbers<[1], [0], [0], [1], [0, 0, 1, 1], [], []>} : vector<32x128xbf16>, vector<128x256xbf16>, vector<32x256xf32> -> vector<32x256xf32>
    %c1_9 = arith.constant 1 : index
    %c0_10 = arith.constant 0 : index
    %c0_11 = arith.constant 0 : index
    %22 = vector.load %arg2[%c1_9, %c0_10, %c0_11] : memref<4x128x256xbf16, #tpu.memory_space<vmem>>, vector<1x128x256xbf16>
    %23 = vector.shape_cast %22 : vector<1x128x256xbf16> to vector<128x256xbf16>
    %cst_12 = arith.constant dense<0.000000e+00> : vector<32x256xf32>
    %24 = tpu.matmul %5, %23, %cst_12 {dimension_numbers = #tpu.dot_dimension_numbers<[1], [0], [0], [1], [0, 0, 1, 1], [], []>} : vector<32x128xbf16>, vector<128x256xbf16>, vector<32x256xf32> -> vector<32x256xf32>
    %25 = arith.addf %21, %24 : vector<32x256xf32>
    %c0_13 = arith.constant 0 : index
    %c0_14 = arith.constant 0 : index
    %26 = vector.load %arg3[%c0_13, %c0_14] : memref<4x256xf32, #tpu.memory_space<vmem>>, vector<1x256xf32>
    %27 = vector.broadcast %26 : vector<1x256xf32> to vector<32x256xf32>
    %28 = arith.addf %25, %27 : vector<32x256xf32>
    %c2_15 = arith.constant 2 : index
    %c0_16 = arith.constant 0 : index
    %29 = vector.load %arg3[%c2_15, %c0_16] : memref<4x256xf32, #tpu.memory_space<vmem>>, vector<1x256xf32>
    %30 = vector.broadcast %14 : vector<32x1xf32> to vector<32x256xf32>
    %31 = vector.broadcast %29 : vector<1x256xf32> to vector<32x256xf32>
    %32 = arith.mulf %30, %31 : vector<32x256xf32>
    %33 = arith.addf %28, %32 : vector<32x256xf32>
    %cst_17 = arith.constant 0.000000e+00 : f32
    %34 = vector.broadcast %cst_17 : f32 to vector<32x256xf32>
    %35 = arith.maximumf %33, %34 : vector<32x256xf32>
    %c2_18 = arith.constant 2 : index
    %c0_19 = arith.constant 0 : index
    %c0_20 = arith.constant 0 : index
    %36 = vector.load %arg2[%c2_18, %c0_19, %c0_20] : memref<4x128x256xbf16, #tpu.memory_space<vmem>>, vector<1x128x256xbf16>
    %37 = vector.shape_cast %36 : vector<1x128x256xbf16> to vector<128x256xbf16>
    %cst_21 = arith.constant dense<0.000000e+00> : vector<32x256xf32>
    %38 = tpu.matmul %5, %37, %cst_21 {dimension_numbers = #tpu.dot_dimension_numbers<[1], [0], [0], [1], [0, 0, 1, 1], [], []>} : vector<32x128xbf16>, vector<128x256xbf16>, vector<32x256xf32> -> vector<32x256xf32>
    %c3 = arith.constant 3 : index
    %c0_22 = arith.constant 0 : index
    %c0_23 = arith.constant 0 : index
    %39 = vector.load %arg2[%c3, %c0_22, %c0_23] : memref<4x128x256xbf16, #tpu.memory_space<vmem>>, vector<1x128x256xbf16>
    %40 = vector.shape_cast %39 : vector<1x128x256xbf16> to vector<128x256xbf16>
    %cst_24 = arith.constant dense<0.000000e+00> : vector<32x256xf32>
    %41 = tpu.matmul %8, %40, %cst_24 {dimension_numbers = #tpu.dot_dimension_numbers<[1], [0], [0], [1], [0, 0, 1, 1], [], []>} : vector<32x128xbf16>, vector<128x256xbf16>, vector<32x256xf32> -> vector<32x256xf32>
    %42 = arith.addf %38, %41 : vector<32x256xf32>
    %c1_25 = arith.constant 1 : index
    %c0_26 = arith.constant 0 : index
    %43 = vector.load %arg3[%c1_25, %c0_26] : memref<4x256xf32, #tpu.memory_space<vmem>>, vector<1x256xf32>
    %44 = vector.broadcast %43 : vector<1x256xf32> to vector<32x256xf32>
    %45 = arith.addf %42, %44 : vector<32x256xf32>
    %c3_27 = arith.constant 3 : index
    %c0_28 = arith.constant 0 : index
    %46 = vector.load %arg3[%c3_27, %c0_28] : memref<4x256xf32, #tpu.memory_space<vmem>>, vector<1x256xf32>
    %47 = vector.broadcast %18 : vector<32x1xf32> to vector<32x256xf32>
    %48 = vector.broadcast %46 : vector<1x256xf32> to vector<32x256xf32>
    %49 = arith.mulf %47, %48 : vector<32x256xf32>
    %50 = arith.addf %45, %49 : vector<32x256xf32>
    %cst_29 = arith.constant 0.000000e+00 : f32
    %51 = vector.broadcast %cst_29 : f32 to vector<32x256xf32>
    %52 = arith.maximumf %50, %51 : vector<32x256xf32>
    %53 = vector.shape_cast %35 : vector<32x256xf32> to vector<2x16x256xf32>
    %c1_30 = arith.constant 1 : index
    %c0_31 = arith.constant 0 : index
    %c0_32 = arith.constant 0 : index
    %c0_33 = arith.constant 0 : index
    %54 = vector.load %arg7[%c1_30, %c0_31, %c0_32, %c0_33] : memref<2x2x17x256xf32, #tpu.memory_space<vmem>>, vector<1x2x16x256xf32>
    %55 = vector.shape_cast %54 : vector<1x2x16x256xf32> to vector<2x16x256xf32>
    %56 = vector.shape_cast %53 : vector<2x16x256xf32> to vector<1x2x16x256xf32>
    tpu.vector_store %arg7[%c1_30, %c0_31, %c0_32, %c0_33], %56 {strides = array<i32>} : memref<2x2x17x256xf32, #tpu.memory_space<vmem>>, vector<1x2x16x256xf32>,
    %57 = vector.shape_cast %52 : vector<32x256xf32> to vector<2x16x256xf32>
    %c0_34 = arith.constant 0 : index
    %c0_35 = arith.constant 0 : index
    %c1_36 = arith.constant 1 : index
    %c0_37 = arith.constant 0 : index
    %58 = vector.load %arg7[%c0_34, %c0_35, %c1_36, %c0_37] : memref<2x2x17x256xf32, #tpu.memory_space<vmem>>, vector<1x2x16x256xf32>
    %59 = vector.shape_cast %58 : vector<1x2x16x256xf32> to vector<2x16x256xf32>
    %60 = vector.shape_cast %57 : vector<2x16x256xf32> to vector<1x2x16x256xf32>
    tpu.vector_store %arg7[%c0_34, %c0_35, %c1_36, %c0_37], %60 {strides = array<i32>} : memref<2x2x17x256xf32, #tpu.memory_space<vmem>>, vector<1x2x16x256xf32>,
    %cst_38 = arith.constant 0.000000e+00 : f32
    %61 = vector.broadcast %cst_38 : f32 to vector<2x1x256xf32>
    %c0_39 = arith.constant 0 : index
    %c0_40 = arith.constant 0 : index
    %c0_41 = arith.constant 0 : index
    %c0_42 = arith.constant 0 : index
    %62 = vector.load %arg7[%c0_39, %c0_40, %c0_41, %c0_42] : memref<2x2x17x256xf32, #tpu.memory_space<vmem>>, vector<1x2x1x256xf32>
    %63 = vector.shape_cast %62 : vector<1x2x1x256xf32> to vector<2x1x256xf32>
    %64 = vector.shape_cast %61 : vector<2x1x256xf32> to vector<1x2x1x256xf32>
    tpu.vector_store %arg7[%c0_39, %c0_40, %c0_41, %c0_42], %64 {strides = array<i32>} : memref<2x2x17x256xf32, #tpu.memory_space<vmem>>, vector<1x2x1x256xf32>,
    %c1_43 = arith.constant 1 : index
    %c0_44 = arith.constant 0 : index
    %c16 = arith.constant 16 : index
    %c0_45 = arith.constant 0 : index
    %65 = vector.load %arg7[%c1_43, %c0_44, %c16, %c0_45] : memref<2x2x17x256xf32, #tpu.memory_space<vmem>>, vector<1x2x1x256xf32>
    %66 = vector.shape_cast %65 : vector<1x2x1x256xf32> to vector<2x1x256xf32>
    %67 = vector.shape_cast %61 : vector<2x1x256xf32> to vector<1x2x1x256xf32>
    tpu.vector_store %arg7[%c1_43, %c0_44, %c16, %c0_45], %67 {strides = array<i32>} : memref<2x2x17x256xf32, #tpu.memory_space<vmem>>, vector<1x2x1x256xf32>,
    %c0_46 = arith.constant 0 : index
    %c0_47 = arith.constant 0 : index
    %c0_48 = arith.constant 0 : index
    %c0_49 = arith.constant 0 : index
    %68 = vector.load %arg7[%c0_46, %c0_47, %c0_48, %c0_49] : memref<2x2x17x256xf32, #tpu.memory_space<vmem>>, vector<1x2x16x256xf32>
    %69 = vector.shape_cast %68 : vector<1x2x16x256xf32> to vector<2x16x256xf32>
    %70 = arith.truncf %69 : vector<2x16x256xf32> to vector<2x16x256xbf16>
    %71 = vector.shape_cast %70 : vector<2x16x256xbf16> to vector<32x256xbf16>
    %c1_50 = arith.constant 1 : index
    %c0_51 = arith.constant 0 : index
    %c0_52 = arith.constant 0 : index
    %c0_53 = arith.constant 0 : index
    %72 = vector.load %arg7[%c1_50, %c0_51, %c0_52, %c0_53] : memref<2x2x17x256xf32, #tpu.memory_space<vmem>>, vector<1x2x16x256xf32>
    %73 = vector.shape_cast %72 : vector<1x2x16x256xf32> to vector<2x16x256xf32>
    %74 = arith.truncf %73 : vector<2x16x256xf32> to vector<2x16x256xbf16>
    %75 = vector.shape_cast %74 : vector<2x16x256xbf16> to vector<32x256xbf16>
    %c0_54 = arith.constant 0 : index
    %c0_55 = arith.constant 0 : index
    %c1_56 = arith.constant 1 : index
    %c0_57 = arith.constant 0 : index
    %76 = vector.load %arg7[%c0_54, %c0_55, %c1_56, %c0_57] : memref<2x2x17x256xf32, #tpu.memory_space<vmem>>, vector<1x2x16x256xf32>
    %77 = vector.shape_cast %76 : vector<1x2x16x256xf32> to vector<2x16x256xf32>
    %78 = arith.truncf %77 : vector<2x16x256xf32> to vector<2x16x256xbf16>
    %79 = vector.shape_cast %78 : vector<2x16x256xbf16> to vector<32x256xbf16>
    %c1_58 = arith.constant 1 : index
    %c0_59 = arith.constant 0 : index
    %c1_60 = arith.constant 1 : index
    %c0_61 = arith.constant 0 : index
    %80 = vector.load %arg7[%c1_58, %c0_59, %c1_60, %c0_61] : memref<2x2x17x256xf32, #tpu.memory_space<vmem>>, vector<1x2x16x256xf32>
    %81 = vector.shape_cast %80 : vector<1x2x16x256xf32> to vector<2x16x256xf32>
    %82 = arith.truncf %81 : vector<2x16x256xf32> to vector<2x16x256xbf16>
    %83 = vector.shape_cast %82 : vector<2x16x256xbf16> to vector<32x256xbf16>
    %c0_62 = arith.constant 0 : index
    %c0_63 = arith.constant 0 : index
    %c0_64 = arith.constant 0 : index
    %84 = vector.load %arg4[%c0_62, %c0_63, %c0_64] : memref<3x256x256xbf16, #tpu.memory_space<vmem>>, vector<1x256x256xbf16>
    %85 = vector.shape_cast %84 : vector<1x256x256xbf16> to vector<256x256xbf16>
    %c1_65 = arith.constant 1 : index
    %c0_66 = arith.constant 0 : index
    %c0_67 = arith.constant 0 : index
    %86 = vector.load %arg4[%c1_65, %c0_66, %c0_67] : memref<3x256x256xbf16, #tpu.memory_space<vmem>>, vector<1x256x256xbf16>
    %87 = vector.shape_cast %86 : vector<1x256x256xbf16> to vector<256x256xbf16>
    %c2_68 = arith.constant 2 : index
    %c0_69 = arith.constant 0 : index
    %c0_70 = arith.constant 0 : index
    %88 = vector.load %arg4[%c2_68, %c0_69, %c0_70] : memref<3x256x256xbf16, #tpu.memory_space<vmem>>, vector<1x256x256xbf16>
    %89 = vector.shape_cast %88 : vector<1x256x256xbf16> to vector<256x256xbf16>
    %c0_71 = arith.constant 0 : index
    %c0_72 = arith.constant 0 : index
    %90 = vector.load %arg5[%c0_71, %c0_72] : memref<1x256xf32, #tpu.memory_space<vmem>>, vector<1x256xf32>
    %cst_73 = arith.constant dense<0.000000e+00> : vector<32x256xf32>
    %91 = tpu.matmul %71, %85, %cst_73 {dimension_numbers = #tpu.dot_dimension_numbers<[1], [0], [0], [1], [0, 0, 1, 1], [], []>} : vector<32x256xbf16>, vector<256x256xbf16>, vector<32x256xf32> -> vector<32x256xf32>
    %cst_74 = arith.constant dense<0.000000e+00> : vector<32x256xf32>
    %92 = tpu.matmul %75, %87, %cst_74 {dimension_numbers = #tpu.dot_dimension_numbers<[1], [0], [0], [1], [0, 0, 1, 1], [], []>} : vector<32x256xbf16>, vector<256x256xbf16>, vector<32x256xf32> -> vector<32x256xf32>
    %93 = arith.addf %91, %92 : vector<32x256xf32>
    %cst_75 = arith.constant dense<0.000000e+00> : vector<32x256xf32>
    %94 = tpu.matmul %79, %89, %cst_75 {dimension_numbers = #tpu.dot_dimension_numbers<[1], [0], [0], [1], [0, 0, 1, 1], [], []>} : vector<32x256xbf16>, vector<256x256xbf16>, vector<32x256xf32> -> vector<32x256xf32>
    %95 = arith.addf %93, %94 : vector<32x256xf32>
    %96 = vector.broadcast %90 : vector<1x256xf32> to vector<32x256xf32>
    %97 = arith.addf %95, %96 : vector<32x256xf32>
    %cst_76 = arith.constant 0.000000e+00 : f32
    %98 = vector.broadcast %cst_76 : f32 to vector<32x256xf32>
    %99 = arith.maximumf %97, %98 : vector<32x256xf32>
    %cst_77 = arith.constant dense<0.000000e+00> : vector<32x256xf32>
    %100 = tpu.matmul %75, %85, %cst_77 {dimension_numbers = #tpu.dot_dimension_numbers<[1], [0], [0], [1], [0, 0, 1, 1], [], []>} : vector<32x256xbf16>, vector<256x256xbf16>, vector<32x256xf32> -> vector<32x256xf32>
    %cst_78 = arith.constant dense<0.000000e+00> : vector<32x256xf32>
    %101 = tpu.matmul %79, %87, %cst_78 {dimension_numbers = #tpu.dot_dimension_numbers<[1], [0], [0], [1], [0, 0, 1, 1], [], []>} : vector<32x256xbf16>, vector<256x256xbf16>, vector<32x256xf32> -> vector<32x256xf32>
    %102 = arith.addf %100, %101 : vector<32x256xf32>
    %cst_79 = arith.constant dense<0.000000e+00> : vector<32x256xf32>
    %103 = tpu.matmul %83, %89, %cst_79 {dimension_numbers = #tpu.dot_dimension_numbers<[1], [0], [0], [1], [0, 0, 1, 1], [], []>} : vector<32x256xbf16>, vector<256x256xbf16>, vector<32x256xf32> -> vector<32x256xf32>
    %104 = arith.addf %102, %103 : vector<32x256xf32>
    %105 = vector.broadcast %90 : vector<1x256xf32> to vector<32x256xf32>
    %106 = arith.addf %104, %105 : vector<32x256xf32>
    %cst_80 = arith.constant 0.000000e+00 : f32
    %107 = vector.broadcast %cst_80 : f32 to vector<32x256xf32>
    %108 = arith.maximumf %106, %107 : vector<32x256xf32>
    %109 = vector.shape_cast %99 : vector<32x256xf32> to vector<2x16x256xf32>
    %c0_81 = arith.constant 0 : index
    %c0_82 = arith.constant 0 : index
    %c0_83 = arith.constant 0 : index
    %110 = vector.load %arg6[%c0_81, %c0_82, %c0_83] : memref<2x16x512xf32, #tpu.memory_space<vmem>>, vector<2x16x256xf32>
    tpu.vector_store %arg6[%c0_81, %c0_82, %c0_83], %109 {strides = array<i32>} : memref<2x16x512xf32, #tpu.memory_space<vmem>>, vector<2x16x256xf32>,
    %111 = vector.shape_cast %108 : vector<32x256xf32> to vector<2x16x256xf32>
    %c0_84 = arith.constant 0 : index
    %c0_85 = arith.constant 0 : index
    %c256 = arith.constant 256 : index
    %112 = vector.load %arg6[%c0_84, %c0_85, %c256] : memref<2x16x512xf32, #tpu.memory_space<vmem>>, vector<2x16x256xf32>
    tpu.vector_store %arg6[%c0_84, %c0_85, %c256], %111 {strides = array<i32>} : memref<2x16x512xf32, #tpu.memory_space<vmem>>, vector<2x16x256xf32>,
    return
  }
  func.func @transform_0(%arg0: i32) -> (i32, i32, i32) {
    %c0_i32 = arith.constant 0 : i32
    %c0_i32_0 = arith.constant 0 : i32
    %c0_i32_1 = arith.constant 0 : i32
    return %arg0, %c0_i32, %c0_i32_0 : i32, i32, i32
  }
  func.func @transform_1(%arg0: i32) -> (i32, i32, i32) {
    %c0_i32 = arith.constant 0 : i32
    %c0_i32_0 = arith.constant 0 : i32
    %c0_i32_1 = arith.constant 0 : i32
    %c0_i32_2 = arith.constant 0 : i32
    return %c0_i32, %c0_i32_0, %c0_i32_1 : i32, i32, i32
  }
  func.func @transform_2(%arg0: i32) -> (i32, i32) {
    %c0_i32 = arith.constant 0 : i32
    %c0_i32_0 = arith.constant 0 : i32
    %c0_i32_1 = arith.constant 0 : i32
    return %c0_i32, %c0_i32_0 : i32, i32
  }
  func.func @transform_3(%arg0: i32) -> (i32, i32, i32) {
    %c0_i32 = arith.constant 0 : i32
    %c0_i32_0 = arith.constant 0 : i32
    %c0_i32_1 = arith.constant 0 : i32
    %c0_i32_2 = arith.constant 0 : i32
    return %c0_i32, %c0_i32_0, %c0_i32_1 : i32, i32, i32
  }
  func.func @transform_4(%arg0: i32) -> (i32, i32) {
    %c0_i32 = arith.constant 0 : i32
    %c0_i32_0 = arith.constant 0 : i32
    %c0_i32_1 = arith.constant 0 : i32
    return %c0_i32, %c0_i32_0 : i32, i32
  }
  func.func @transform_5(%arg0: i32) -> (i32, i32, i32) {
    %c0_i32 = arith.constant 0 : i32
    %c0_i32_0 = arith.constant 0 : i32
    %c0_i32_1 = arith.constant 0 : i32
    return %arg0, %c0_i32, %c0_i32_0 : i32, i32, i32
  }
}

</mosaic_0001>

<llo_original>
// kernel: tile.13
$region0: #{tile.13}
  #allocation0 [shape = 's32[1]{0}', space=sflag, size = 0x4, scoped, tag = 'scoped memory for tile.13']
  %s0 = inlined_call_operand.vmem [shape: f32[8], index: 0, kind: input, shape index: {}]
  %s1 = inlined_call_operand.vmem [shape: f32[32,8], index: 1, kind: output, shape index: {}]
  // Predicated region
  $region2: #{tile.13} parent=0 // pred_check
    _
  $region3: #{tile.13} parent=0 // pred_check_branch
    %3 = sbr.rel (0) target = $region5
  $region4: #{tile.13} parent=0 // pred_region
    _
  $region5: #{tile.13} parent=0 // pred_fallthru
    _
  %v4 = vld [vmem:[%s0] ss:$0 sm:$0xff]
  %5 = vst [vmem:[%s1] sm:$0xff] %v4
  %s6 = scalar_lea.vmem %s1, 8
  %7 = vst [vmem:[%s6] sm:$0xff] %v4
  %s8 = scalar_lea.vmem %s1, 16
  %9 = vst [vmem:[%s8] sm:$0xff] %v4
  %s10 = scalar_lea.vmem %s1, 24
  %11 = vst [vmem:[%s10] sm:$0xff] %v4

// kernel: tile.14
$region0: #{tile.14}
  %s0 = inlined_call_operand.vmem [shape: f32[32,8], index: 0, kind: input, shape index: {}]
  %s1 = inlined_call_operand.vmem [shape: f32[1,256], index: 1, kind: output, shape index: {}]
  $region1: #{tile.14} parent=0
    #allocation0 [shape = 'u8[8192]{0}', space=vmem, size = 0x2000, scoped, tag = 'scoped mem for output reshape']
    %s2 = smov 3
    %v3 = vld [vmem:[%s0] ss:$16 sm:%s2]
    %vm4 = vcmask 64512
    %5 = vst.msk [vmem:[#allocation0] ss:$8 sm:$0x3] %vm4, %v3
    %s6 = scalar_lea.vmem %s0, 15
    %s7 = smov 3
    %v8 = vld [vmem:[%s6] ss:$16 sm:%s7]
    %9 = vrot.lane.b32.xlu0 %v8, 120
    %v10 = vpop.permute.xlu0 %9
    %vm11 = vcmask 1048512
    %12 = vst.msk [vmem:[#allocation0] ss:$8 sm:$0x3] %vm11, %v10
    %s13 = scalar_lea.vmem %s0, 14
    %s14 = smov 3
    %v15 = vld [vmem:[%s13] ss:$16 sm:%s14]
    %16 = vrot.lane.b32.xlu0 %v15, 112
    %v17 = vpop.permute.xlu0 %16
    %vm18 = vcmask 982912
    %19 = vst.msk [vmem:[#allocation0] ss:$8 sm:$0x3] %vm18, %v17
    %s20 = scalar_lea.vmem %s0, 13
    %s21 = smov 3
    %v22 = vld [vmem:[%s20] ss:$16 sm:%s21]
    %23 = vrot.lane.b32.xlu0 %v22, 104
    %v24 = vpop.permute.xlu0 %23
    %vm25 = vcmask 917312
    %26 = vst.msk [vmem:[#allocation0] ss:$8 sm:$0x3] %vm25, %v24
    %s27 = scalar_lea.vmem %s0, 12
    %s28 = smov 3
    %v29 = vld [vmem:[%s27] ss:$16 sm:%s28]
    %30 = vrot.lane.b32.xlu0 %v29, 96
    %v31 = vpop.permute.xlu0 %30
    %vm32 = vcmask 851712
    %33 = vst.msk [vmem:[#allocation0] ss:$8 sm:$0x3] %vm32, %v31
    %s34 = scalar_lea.vmem %s0, 11
    %s35 = smov 3
    %v36 = vld [vmem:[%s34] ss:$16 sm:%s35]
    %37 = vrot.lane.b32.xlu0 %v36, 88
    %v38 = vpop.permute.xlu0 %37
    %vm39 = vcmask 786112
    %40 = vst.msk [vmem:[#allocation0] ss:$8 sm:$0x3] %vm39, %v38
    %s41 = scalar_lea.vmem %s0, 10
    %s42 = smov 3
    %v43 = vld [vmem:[%s41] ss:$16 sm:%s42]
    %44 = vrot.lane.b32.xlu0 %v43, 80
    %v45 = vpop.permute.xlu0 %44
    %vm46 = vcmask 720512
    %47 = vst.msk [vmem:[#allocation0] ss:$8 sm:$0x3] %vm46, %v45
    %s48 = scalar_lea.vmem %s0, 9
    %s49 = smov 3
    %v50 = vld [vmem:[%s48] ss:$16 sm:%s49]
    %51 = vrot.lane.b32.xlu0 %v50, 72
    %v52 = vpop.permute.xlu0 %51
    %vm53 = vcmask 654912
    %54 = vst.msk [vmem:[#allocation0] ss:$8 sm:$0x3] %vm53, %v52
    %s55 = scalar_lea.vmem %s0, 8
    %s56 = smov 3
    %v57 = vld [vmem:[%s55] ss:$16 sm:%s56]
    %58 = vrot.lane.b32.xlu0 %v57, 64
    %v59 = vpop.permute.xlu0 %58
    %vm60 = vcmask 589312
    %61 = vst.msk [vmem:[#allocation0] ss:$8 sm:$0x3] %vm60, %v59
    %s62 = scalar_lea.vmem %s0, 7
    %s63 = smov 3
    %v64 = vld [vmem:[%s62] ss:$16 sm:%s63]
    %65 = vrot.lane.b32.xlu0 %v64, 56
    %v66 = vpop.permute.xlu0 %65
    %vm67 = vcmask 523712
    %68 = vst.msk [vmem:[#allocation0] ss:$8 sm:$0x3] %vm67, %v66
    %s69 = scalar_lea.vmem %s0, 6
    %s70 = smov 3
    %v71 = vld [vmem:[%s69] ss:$16 sm:%s70]
    %72 = vrot.lane.b32.xlu0 %v71, 48
    %v73 = vpop.permute.xlu0 %72
    %vm74 = vcmask 458112
    %75 = vst.msk [vmem:[#allocation0] ss:$8 sm:$0x3] %vm74, %v73
    %s76 = scalar_lea.vmem %s0, 5
    %s77 = smov 3
    %v78 = vld [vmem:[%s76] ss:$16 sm:%s77]
    %79 = vrot.lane.b32.xlu0 %v78, 40
    %v80 = vpop.permute.xlu0 %79
    %vm81 = vcmask 392512
    %82 = vst.msk [vmem:[#allocation0] ss:$8 sm:$0x3] %vm81, %v80
    %s83 = scalar_lea.vmem %s0, 4
    %s84 = smov 3
    %v85 = vld [vmem:[%s83] ss:$16 sm:%s84]
    %86 = vrot.lane.b32.xlu0 %v85, 32
    %v87 = vpop.permute.xlu0 %86
    %vm88 = vcmask 326912
    %89 = vst.msk [vmem:[#allocation0] ss:$8 sm:$0x3] %vm88, %v87
    %s90 = scalar_lea.vmem %s0, 3
    %s91 = smov 3
    %v92 = vld [vmem:[%s90] ss:$16 sm:%s91]
    %93 = vrot.lane.b32.xlu0 %v92, 24
    %v94 = vpop.permute.xlu0 %93
    %vm95 = vcmask 261312
    %96 = vst.msk [vmem:[#allocation0] ss:$8 sm:$0x3] %vm95, %v94
    %s97 = scalar_lea.vmem %s0, 2
    %s98 = smov 3
    %v99 = vld [vmem:[%s97] ss:$16 sm:%s98]
    %100 = vrot.lane.b32.xlu0 %v99, 16
    %v101 = vpop.permute.xlu0 %100
    %vm102 = vcmask 195712
    %103 = vst.msk [vmem:[#allocation0] ss:$8 sm:$0x3] %vm102, %v101
    %s104 = scalar_lea.vmem %s0, 1
    %s105 = smov 3
    %v106 = vld [vmem:[%s104] ss:$16 sm:%s105]
    %107 = vrot.lane.b32.xlu0 %v106, 8
    %v108 = vpop.permute.xlu0 %107
    %vm109 = vcmask 130112
    %110 = vst.msk [vmem:[#allocation0] ss:$8 sm:$0x3] %vm109, %v108
    %s112 = sshllo.u32 0, 1
    %v114 = vld [vmem:[#allocation0] sm:%s112]
    %s115 = sshllo.u32 0, 1
    %116 = vst [vmem:[%s1] sm:%s115] %v114
    %s117 = scalar_lea.vmem [#allocation0], 8
    %v118 = vld [vmem:[%s117] sm:%s112]
    %s119 = sshllo.u32 0, 1
    %s120 = scalar_lea.vmem %s1, 1
    %121 = vst [vmem:[%s120] sm:%s119] %v118

// kernel: up_forward.1
$region0: #{up_forward.1}
  #allocation0 [shape = 'u32[]', space=smem, size = 0x4, offset = 0x4, fixed_abs, tag = 'smem constant byte address 0x4 - core index']
  #allocation1 [shape = 'u32[144,128]{1,0:T(1,128)}', space=vmem, size = 0x12000, scoped, tag = 'internal scratch']
  #allocation2 [shape = 'f32[2,2,17,256]{3,2,1,0:T(8,128)}', space=vmem, size = 0x18000, scoped, tag = 'scratch operand']
  %s0 = inlined_call_operand.vmem [shape: f32[2,18,128], index: 0, kind: input, shape index: {}]
  %s1 = inlined_call_operand.vmem [shape: bf16[4,128,256], index: 1, kind: input, shape index: {}]
  %s2 = inlined_call_operand.vmem [shape: f32[4,256], index: 2, kind: input, shape index: {}]
  %s3 = inlined_call_operand.vmem [shape: bf16[3,256,256], index: 3, kind: input, shape index: {}]
  %s4 = inlined_call_operand.vmem [shape: f32[1,256], index: 4, kind: input, shape index: {}]
  %s5 = inlined_call_operand.vmem [shape: f32[2,16,512], index: 5, kind: output, shape index: {}]
  %s6 = sld [smem:[#allocation0]]
  $region30: #{up_forward.1} parent=0
    _
  %s8 = ssub.s32 1, %s6
  %s9 = scalar_select 0, %s8, %s6
  // Predicated region
  $region2: #{up_forward.1} parent=0 // pred_check
    _
  $region3: #{up_forward.1} parent=0 // pred_check_branch
    %11 = sbr.rel (0) target = $region5
  $region4: #{up_forward.1} parent=0 // pred_region
    _
  $region5: #{up_forward.1} parent=0 // pred_fallthru
    _
  // Predicated region
  $region6: #{up_forward.1} parent=0 // pred_check
    _
  $region7: #{up_forward.1} parent=0 // pred_check_branch
    %13 = sbr.rel (0) target = $region9
  $region8: #{up_forward.1} parent=0 // pred_region
    _
  $region9: #{up_forward.1} parent=0 // pred_fallthru
    _
  // Predicated region
  $region10: #{up_forward.1} parent=0 // pred_check
    _
  $region11: #{up_forward.1} parent=0 // pred_check_branch
    %15 = sbr.rel (0) target = $region13
  $region12: #{up_forward.1} parent=0 // pred_region
    _
  $region13: #{up_forward.1} parent=0 // pred_fallthru
    _
  // Predicated region
  $region14: #{up_forward.1} parent=0 // pred_check
    _
  $region15: #{up_forward.1} parent=0 // pred_check_branch
    %17 = sbr.rel (0) target = $region17
  $region16: #{up_forward.1} parent=0 // pred_region
    _
  $region17: #{up_forward.1} parent=0 // pred_fallthru
    _
  // Predicated region
  $region18: #{up_forward.1} parent=0 // pred_check
    _
  $region19: #{up_forward.1} parent=0 // pred_check_branch
    %19 = sbr.rel (0) target = $region21
  $region20: #{up_forward.1} parent=0 // pred_region
    _
  $region21: #{up_forward.1} parent=0 // pred_fallthru
    _
  %v21 = vld [vmem:[%s0] sm:$0xff]
  %v22 = vld [vmem:[%s0 + $0x8] sm:$0xff]
  %v23 = vld [vmem:[%s0 + $0x18] sm:$0xff]
  %v24 = vld [vmem:[%s0 + $0x20] sm:$0xff]
  %v25 = vpack.c.bf16 %v22, %v21
  %v26 = vpack.c.bf16 %v24, %v23
  %v27 = vld [vmem:[%s0 + $0x1] sm:$0xff]
  %v28 = vld [vmem:[%s0 + $0x9] sm:$0xff]
  %v29 = vld [vmem:[%s0 + $0x19] sm:$0xff]
  %v30 = vld [vmem:[%s0 + $0x21] sm:$0xff]
  %v31 = vpack.c.bf16 %v28, %v27
  %v32 = vpack.c.bf16 %v30, %v29
  %v33 = vld [vmem:[%s0 + $0x2] sm:$0xff]
  %v34 = vld [vmem:[%s0 + $0xa] sm:$0xff]
  %v35 = vld [vmem:[%s0 + $0x1a] sm:$0xff]
  %v36 = vld [vmem:[%s0 + $0x22] sm:$0xff]
  %v37 = vpack.c.bf16 %v34, %v33
  %v38 = vpack.c.bf16 %v36, %v35
  %v39 = vlaneseq
  %v40 = vshrl.u32 %v39, 7
  %v41 = vadd.s32 %v40, 8
  %vm42 = vcmp.gt.s32.totalorder %v40, 0
  %vm43 = vcmp.gt.s32.totalorder %v41, 0
  %v44 = vsel %vm42, 1, 0
  %v45 = vsel %vm43, 1, 0
  %v46 = vcvt.s32.f32 %v44
  %v47 = vcvt.s32.f32 %v45
  %vm48 = vcmp.lt.s32.totalorder %v40, 15
  %vm49 = vcmp.lt.s32.totalorder %v41, 15
  %v50 = vsel %vm48, 1, 0
  %v51 = vsel %vm49, 1, 0
  %v52 = vcvt.s32.f32 %v50
  %v53 = vcvt.s32.f32 %v51
  %v54 = vld [vmem:[%s1] sm:$0xff]
  %v55 = vld [vmem:[%s1 + $0x8] sm:$0xff]
  %v56 = vld [vmem:[%s1 + $0x10] sm:$0xff]
  %v57 = vld [vmem:[%s1 + $0x18] sm:$0xff]
  %v58 = vld [vmem:[%s1 + $0x20] sm:$0xff]
  %v59 = vld [vmem:[%s1 + $0x28] sm:$0xff]
  %v60 = vld [vmem:[%s1 + $0x30] sm:$0xff]
  %v61 = vld [vmem:[%s1 + $0x38] sm:$0xff]
  %v62 = vld [vmem:[%s1 + $0x40] sm:$0xff]
  %v63 = vld [vmem:[%s1 + $0x48] sm:$0xff]
  %v64 = vld [vmem:[%s1 + $0x50] sm:$0xff]
  %v65 = vld [vmem:[%s1 + $0x58] sm:$0xff]
  %v66 = vld [vmem:[%s1 + $0x60] sm:$0xff]
  %v67 = vld [vmem:[%s1 + $0x68] sm:$0xff]
  %v68 = vld [vmem:[%s1 + $0x70] sm:$0xff]
  %v69 = vld [vmem:[%s1 + $0x78] sm:$0xff]
  %s70 = scalar_lea.vmem %s1, 128
  %v71 = vld [vmem:[%s70] sm:$0xff]
  %v72 = vld [vmem:[%s70 + $0x8] sm:$0xff]
  %v73 = vld [vmem:[%s70 + $0x10] sm:$0xff]
  %v74 = vld [vmem:[%s70 + $0x18] sm:$0xff]
  %v75 = vld [vmem:[%s70 + $0x20] sm:$0xff]
  %v76 = vld [vmem:[%s70 + $0x28] sm:$0xff]
  %v77 = vld [vmem:[%s70 + $0x30] sm:$0xff]
  %v78 = vld [vmem:[%s70 + $0x38] sm:$0xff]
  %v79 = vld [vmem:[%s70 + $0x40] sm:$0xff]
  %v80 = vld [vmem:[%s70 + $0x48] sm:$0xff]
  %v81 = vld [vmem:[%s70 + $0x50] sm:$0xff]
  %v82 = vld [vmem:[%s70 + $0x58] sm:$0xff]
  %v83 = vld [vmem:[%s70 + $0x60] sm:$0xff]
  %v84 = vld [vmem:[%s70 + $0x68] sm:$0xff]
  %v85 = vld [vmem:[%s70 + $0x70] sm:$0xff]
  %v86 = vld [vmem:[%s70 + $0x78] sm:$0xff]
  %v103 = vunpack.c.l.b16 %v71
  %v104 = vunpack.c.h.b16 %v71
  %v105 = vunpack.c.l.b16 %v72
  %v106 = vunpack.c.h.b16 %v72
  %v107 = vunpack.c.l.b16 %v73
  %v108 = vunpack.c.h.b16 %v73
  %v109 = vunpack.c.l.b16 %v74
  %v110 = vunpack.c.h.b16 %v74
  %v111 = vunpack.c.l.b16 %v75
  %v112 = vunpack.c.h.b16 %v75
  %v113 = vunpack.c.l.b16 %v76
  %v114 = vunpack.c.h.b16 %v76
  %v115 = vunpack.c.l.b16 %v77
  %v116 = vunpack.c.h.b16 %v77
  %v117 = vunpack.c.l.b16 %v78
  %v118 = vunpack.c.h.b16 %v78
  %v119 = vunpack.c.l.b16 %v79
  %v120 = vunpack.c.h.b16 %v79
  %v121 = vunpack.c.l.b16 %v80
  %v122 = vunpack.c.h.b16 %v80
  %v123 = vunpack.c.l.b16 %v81
  %v124 = vunpack.c.h.b16 %v81
  %v125 = vunpack.c.l.b16 %v82
  %v126 = vunpack.c.h.b16 %v82
  %v127 = vunpack.c.l.b16 %v83
  %v128 = vunpack.c.h.b16 %v83
  %v129 = vunpack.c.l.b16 %v84
  %v130 = vunpack.c.h.b16 %v84
  %v131 = vunpack.c.l.b16 %v85
  %v132 = vunpack.c.h.b16 %v85
  %v133 = vunpack.c.l.b16 %v86
  %v134 = vunpack.c.h.b16 %v86
  %v135 = vpack.c.b16 %v105, %v103
  %v136 = vpack.c.b16 %v106, %v104
  %v137 = vpack.c.b16 %v109, %v107
  %v138 = vpack.c.b16 %v110, %v108
  %v139 = vpack.c.b16 %v113, %v111
  %v140 = vpack.c.b16 %v114, %v112
  %v141 = vpack.c.b16 %v117, %v115
  %v142 = vpack.c.b16 %v118, %v116
  %v143 = vpack.c.b16 %v121, %v119
  %v144 = vpack.c.b16 %v122, %v120
  %v145 = vpack.c.b16 %v125, %v123
  %v146 = vpack.c.b16 %v126, %v124
  %v147 = vpack.c.b16 %v129, %v127
  %v148 = vpack.c.b16 %v130, %v128
  %v149 = vpack.c.b16 %v133, %v131
  %v150 = vpack.c.b16 %v134, %v132
  %167 = vmatprep.subr.bf16.mxu0 %v136
  %168 = vmatpush1.bf16.msra.mxu0 %v135
  %169 = vmatprep.subr.bf16.mxu0 %v138
  %170 = vmatpush1.bf16.msra.mxu0 %v137
  %171 = vmatprep.subr.bf16.mxu0 %v140
  %172 = vmatpush1.bf16.msra.mxu0 %v139
  %173 = vmatprep.subr.bf16.mxu0 %v142
  %174 = vmatpush1.bf16.msra.mxu0 %v141
  %175 = vmatprep.subr.bf16.mxu0 %v144
  %176 = vmatpush1.bf16.msra.mxu0 %v143
  %177 = vmatprep.subr.bf16.mxu0 %v146
  %178 = vmatpush1.bf16.msra.mxu0 %v145
  %179 = vmatprep.subr.bf16.mxu0 %v148
  %180 = vmatpush1.bf16.msra.mxu0 %v147
  %181 = vmatprep.subr.bf16.mxu0 %v150
  %182 = vmatpush1.bf16.msra.mxu0 %v149
  %183 = vmatprep.subr.bf16.mxu0 0
  %184 = vmatpush1.bf16.msra.mxu0 0
  %185 = vmatprep.subr.bf16.mxu0 0
  %186 = vmatpush1.bf16.msra.mxu0 0
  %187 = vmatprep.subr.bf16.mxu0 0
  %188 = vmatpush1.bf16.msra.mxu0 0
  %189 = vmatprep.subr.bf16.mxu0 0
  %190 = vmatpush1.bf16.msra.mxu0 0
  %191 = vmatprep.subr.bf16.mxu0 0
  %192 = vmatpush1.bf16.msra.mxu0 0
  %193 = vmatprep.subr.bf16.mxu0 0
  %194 = vmatpush1.bf16.msra.mxu0 0
  %195 = vmatprep.subr.bf16.mxu0 0
  %196 = vmatpush1.bf16.msra.mxu0 0
  %197 = vmatprep.subr.bf16.mxu0 0
  %198 = vmatpush1.bf16.msra.mxu0 0
  %199 = vmatprep.mubr.bf16.mxu0 0
  %200 = vmatmul.mubr.bf16.gmra.mrb[0].mxu0 %v31
  %v201 = vpop.f32.mrb[0].mxu0
  %v202 = vadd.f32 0.0, %v201
  %v203 = vpop.f32.mrb[0].mxu0
  %v204 = vadd.f32 0.0, %v203
  %v205 = vpop.f32.mrb[0].mxu0
  %v206 = vadd.f32 0.0, %v205
  %v207 = vpop.f32.mrb[0].mxu0
  %v208 = vadd.f32 0.0, %v207
  %209 = vmatprep.mubr.bf16.mxu0 0
  %210 = vmatmul.mubr.bf16.gmra.mrb[0].mxu0 %v32
  %v211 = vpop.f32.mrb[0].mxu0
  %v212 = vadd.f32 0.0, %v211
  %v213 = vpop.f32.mrb[0].mxu0
  %v214 = vadd.f32 0.0, %v213
  %v215 = vpop.f32.mrb[0].mxu0
  %v216 = vadd.f32 0.0, %v215
  %v217 = vpop.f32.mrb[0].mxu0
  %v218 = vadd.f32 0.0, %v217
  %219 = vdwg.mxu0
  %v236 = vunpack.c.l.b16 %v54
  %v237 = vunpack.c.h.b16 %v54
  %v238 = vunpack.c.l.b16 %v55
  %v239 = vunpack.c.h.b16 %v55
  %v240 = vunpack.c.l.b16 %v56
  %v241 = vunpack.c.h.b16 %v56
  %v242 = vunpack.c.l.b16 %v57
  %v243 = vunpack.c.h.b16 %v57
  %v244 = vunpack.c.l.b16 %v58
  %v245 = vunpack.c.h.b16 %v58
  %v246 = vunpack.c.l.b16 %v59
  %v247 = vunpack.c.h.b16 %v59
  %v248 = vunpack.c.l.b16 %v60
  %v249 = vunpack.c.h.b16 %v60
  %v250 = vunpack.c.l.b16 %v61
  %v251 = vunpack.c.h.b16 %v61
  %v252 = vunpack.c.l.b16 %v62
  %v253 = vunpack.c.h.b16 %v62
  %v254 = vunpack.c.l.b16 %v63
  %v255 = vunpack.c.h.b16 %v63
  %v256 = vunpack.c.l.b16 %v64
  %v257 = vunpack.c.h.b16 %v64
  %v258 = vunpack.c.l.b16 %v65
  %v259 = vunpack.c.h.b16 %v65
  %v260 = vunpack.c.l.b16 %v66
  %v261 = vunpack.c.h.b16 %v66
  %v262 = vunpack.c.l.b16 %v67
  %v263 = vunpack.c.h.b16 %v67
  %v264 = vunpack.c.l.b16 %v68
  %v265 = vunpack.c.h.b16 %v68
  %v266 = vunpack.c.l.b16 %v69
  %v267 = vunpack.c.h.b16 %v69
  %v268 = vpack.c.b16 %v238, %v236
  %v269 = vpack.c.b16 %v239, %v237
  %v270 = vpack.c.b16 %v242, %v240
  %v271 = vpack.c.b16 %v243, %v241
  %v272 = vpack.c.b16 %v246, %v244
  %v273 = vpack.c.b16 %v247, %v245
  %v274 = vpack.c.b16 %v250, %v248
  %v275 = vpack.c.b16 %v251, %v249
  %v276 = vpack.c.b16 %v254, %v252
  %v277 = vpack.c.b16 %v255, %v253
  %v278 = vpack.c.b16 %v258, %v256
  %v279 = vpack.c.b16 %v259, %v257
  %v280 = vpack.c.b16 %v262, %v260
  %v281 = vpack.c.b16 %v263, %v261
  %v282 = vpack.c.b16 %v266, %v264
  %v283 = vpack.c.b16 %v267, %v265
  %300 = vmatprep.subr.bf16.mxu0 %v269
  %301 = vmatpush1.bf16.msra.mxu0 %v268
  %302 = vmatprep.subr.bf16.mxu0 %v271
  %303 = vmatpush1.bf16.msra.mxu0 %v270
  %304 = vmatprep.subr.bf16.mxu0 %v273
  %305 = vmatpush1.bf16.msra.mxu0 %v272
  %306 = vmatprep.subr.bf16.mxu0 %v275
  %307 = vmatpush1.bf16.msra.mxu0 %v274
  %308 = vmatprep.subr.bf16.mxu0 %v277
  %309 = vmatpush1.bf16.msra.mxu0 %v276
  %310 = vmatprep.subr.bf16.mxu0 %v279
  %311 = vmatpush1.bf16.msra.mxu0 %v278
  %312 = vmatprep.subr.bf16.mxu0 %v281
  %313 = vmatpush1.bf16.msra.mxu0 %v280
  %314 = vmatprep.subr.bf16.mxu0 %v283
  %315 = vmatpush1.bf16.msra.mxu0 %v282
  %316 = vmatprep.subr.bf16.mxu0 0
  %317 = vmatpush1.bf16.msra.mxu0 0
  %318 = vmatprep.subr.bf16.mxu0 0
  %319 = vmatpush1.bf16.msra.mxu0 0
  %320 = vmatprep.subr.bf16.mxu0 0
  %321 = vmatpush1.bf16.msra.mxu0 0
  %322 = vmatprep.subr.bf16.mxu0 0
  %323 = vmatpush1.bf16.msra.mxu0 0
  %324 = vmatprep.subr.bf16.mxu0 0
  %325 = vmatpush1.bf16.msra.mxu0 0
  %326 = vmatprep.subr.bf16.mxu0 0
  %327 = vmatpush1.bf16.msra.mxu0 0
  %328 = vmatprep.subr.bf16.mxu0 0
  %329 = vmatpush1.bf16.msra.mxu0 0
  %330 = vmatprep.subr.bf16.mxu0 0
  %331 = vmatpush1.bf16.msra.mxu0 0
  %332 = vmatprep.mubr.bf16.mxu0 0
  %333 = vmatmul.mubr.bf16.gmra.mrb[0].mxu0 %v25
  %v334 = vpop.f32.mrb[0].mxu0
  %v335 = vadd.f32 %v202, %v334
  %v336 = vpop.f32.mrb[0].mxu0
  %v337 = vadd.f32 %v204, %v336
  %v338 = vpop.f32.mrb[0].mxu0
  %v339 = vadd.f32 %v206, %v338
  %v340 = vpop.f32.mrb[0].mxu0
  %v341 = vadd.f32 %v208, %v340
  %342 = vmatprep.mubr.bf16.mxu0 0
  %343 = vmatmul.mubr.bf16.gmra.mrb[0].mxu0 %v26
  %v344 = vpop.f32.mrb[0].mxu0
  %v345 = vadd.f32 %v212, %v344
  %v346 = vpop.f32.mrb[0].mxu0
  %v347 = vadd.f32 %v214, %v346
  %v348 = vpop.f32.mrb[0].mxu0
  %v349 = vadd.f32 %v216, %v348
  %v350 = vpop.f32.mrb[0].mxu0
  %v351 = vadd.f32 %v218, %v350
  %352 = vdwg.mxu0
  %v353 = vld [vmem:[%s2] ss:$4 sm:$0x3]
  %v355 = vlaneseq
  %v356 = vshrl.u32 %v355, 7
  %v357 = vsub.s32 0, %v356
  %v358 = vrot.slane %v353, %v357
  %v359 = vlaneseq
  %v360 = vshrl.u32 %v359, 7
  %v361 = vsub.s32 1, %v360
  %v362 = vrot.slane %v353, %v361
  %v365 = vadd.f32 %v335, %v358
  %v366 = vadd.f32 %v337, %v362
  %v367 = vadd.f32 %v339, %v358
  %v368 = vadd.f32 %v341, %v362
  %v369 = vadd.f32 %v345, %v358
  %v370 = vadd.f32 %v347, %v362
  %v371 = vadd.f32 %v349, %v358
  %v372 = vadd.f32 %v351, %v362
  %s373 = scalar_lea.vmem %s2, 2
  %v374 = vld [vmem:[%s373] ss:$4 sm:$0x3]
  %v376 = vlaneseq
  %v377 = vshrl.u32 %v376, 7
  %v378 = vsub.s32 0, %v377
  %v379 = vrot.slane %v374, %v378
  %v380 = vlaneseq
  %v381 = vshrl.u32 %v380, 7
  %v382 = vsub.s32 1, %v381
  %v383 = vrot.slane %v374, %v382
  %v386 = vmul.f32 %v46, %v379
  %v387 = vmul.f32 %v46, %v383
  %v388 = vmul.f32 %v47, %v379
  %v389 = vmul.f32 %v47, %v383
  %v390 = vadd.f32 %v365, %v386
  %v391 = vadd.f32 %v366, %v387
  %v392 = vadd.f32 %v367, %v388
  %v393 = vadd.f32 %v368, %v389
  %v394 = vadd.f32 %v369, %v386
  %v395 = vadd.f32 %v370, %v387
  %v396 = vadd.f32 %v371, %v388
  %v397 = vadd.f32 %v372, %v389
  %v398 = vmax.f32 %v390, 0.0
  %v399 = vmax.f32 %v391, 0.0
  %v400 = vmax.f32 %v392, 0.0
  %v401 = vmax.f32 %v393, 0.0
  %v402 = vmax.f32 %v394, 0.0
  %v403 = vmax.f32 %v395, 0.0
  %v404 = vmax.f32 %v396, 0.0
  %v405 = vmax.f32 %v397, 0.0
  %s406 = scalar_lea.vmem %s1, 256
  %v407 = vld [vmem:[%s406] sm:$0xff]
  %v408 = vld [vmem:[%s406 + $0x8] sm:$0xff]
  %v409 = vld [vmem:[%s406 + $0x10] sm:$0xff]
  %v410 = vld [vmem:[%s406 + $0x18] sm:$0xff]
  %v411 = vld [vmem:[%s406 + $0x20] sm:$0xff]
  %v412 = vld [vmem:[%s406 + $0x28] sm:$0xff]
  %v413 = vld [vmem:[%s406 + $0x30] sm:$0xff]
  %v414 = vld [vmem:[%s406 + $0x38] sm:$0xff]
  %v415 = vld [vmem:[%s406 + $0x40] sm:$0xff]
  %v416 = vld [vmem:[%s406 + $0x48] sm:$0xff]
  %v417 = vld [vmem:[%s406 + $0x50] sm:$0xff]
  %v418 = vld [vmem:[%s406 + $0x58] sm:$0xff]
  %v419 = vld [vmem:[%s406 + $0x60] sm:$0xff]
  %v420 = vld [vmem:[%s406 + $0x68] sm:$0xff]
  %v421 = vld [vmem:[%s406 + $0x70] sm:$0xff]
  %v422 = vld [vmem:[%s406 + $0x78] sm:$0xff]
  %s423 = scalar_lea.vmem %s1, 384
  %v424 = vld [vmem:[%s423] sm:$0xff]
  %v425 = vld [vmem:[%s423 + $0x8] sm:$0xff]
  %v426 = vld [vmem:[%s423 + $0x10] sm:$0xff]
  %v427 = vld [vmem:[%s423 + $0x18] sm:$0xff]
  %v428 = vld [vmem:[%s423 + $0x20] sm:$0xff]
  %v429 = vld [vmem:[%s423 + $0x28] sm:$0xff]
  %v430 = vld [vmem:[%s423 + $0x30] sm:$0xff]
  %v431 = vld [vmem:[%s423 + $0x38] sm:$0xff]
  %v432 = vld [vmem:[%s423 + $0x40] sm:$0xff]
  %v433 = vld [vmem:[%s423 + $0x48] sm:$0xff]
  %v434 = vld [vmem:[%s423 + $0x50] sm:$0xff]
  %v435 = vld [vmem:[%s423 + $0x58] sm:$0xff]
  %v436 = vld [vmem:[%s423 + $0x60] sm:$0xff]
  %v437 = vld [vmem:[%s423 + $0x68] sm:$0xff]
  %v438 = vld [vmem:[%s423 + $0x70] sm:$0xff]
  %v439 = vld [vmem:[%s423 + $0x78] sm:$0xff]
  %v456 = vunpack.c.l.b16 %v424
  %v457 = vunpack.c.h.b16 %v424
  %v458 = vunpack.c.l.b16 %v425
  %v459 = vunpack.c.h.b16 %v425
  %v460 = vunpack.c.l.b16 %v426
  %v461 = vunpack.c.h.b16 %v426
  %v462 = vunpack.c.l.b16 %v427
  %v463 = vunpack.c.h.b16 %v427
  %v464 = vunpack.c.l.b16 %v428
  %v465 = vunpack.c.h.b16 %v428
  %v466 = vunpack.c.l.b16 %v429
  %v467 = vunpack.c.h.b16 %v429
  %v468 = vunpack.c.l.b16 %v430
  %v469 = vunpack.c.h.b16 %v430
  %v470 = vunpack.c.l.b16 %v431
  %v471 = vunpack.c.h.b16 %v431
  %v472 = vunpack.c.l.b16 %v432
  %v473 = vunpack.c.h.b16 %v432
  %v474 = vunpack.c.l.b16 %v433
  %v475 = vunpack.c.h.b16 %v433
  %v476 = vunpack.c.l.b16 %v434
  %v477 = vunpack.c.h.b16 %v434
  %v478 = vunpack.c.l.b16 %v435
  %v479 = vunpack.c.h.b16 %v435
  %v480 = vunpack.c.l.b16 %v436
  %v481 = vunpack.c.h.b16 %v436
  %v482 = vunpack.c.l.b16 %v437
  %v483 = vunpack.c.h.b16 %v437
  %v484 = vunpack.c.l.b16 %v438
  %v485 = vunpack.c.h.b16 %v438
  %v486 = vunpack.c.l.b16 %v439
  %v487 = vunpack.c.h.b16 %v439
  %v488 = vpack.c.b16 %v458, %v456
  %v489 = vpack.c.b16 %v459, %v457
  %v490 = vpack.c.b16 %v462, %v460
  %v491 = vpack.c.b16 %v463, %v461
  %v492 = vpack.c.b16 %v466, %v464
  %v493 = vpack.c.b16 %v467, %v465
  %v494 = vpack.c.b16 %v470, %v468
  %v495 = vpack.c.b16 %v471, %v469
  %v496 = vpack.c.b16 %v474, %v472
  %v497 = vpack.c.b16 %v475, %v473
  %v498 = vpack.c.b16 %v478, %v476
  %v499 = vpack.c.b16 %v479, %v477
  %v500 = vpack.c.b16 %v482, %v480
  %v501 = vpack.c.b16 %v483, %v481
  %v502 = vpack.c.b16 %v486, %v484
  %v503 = vpack.c.b16 %v487, %v485
  %520 = vmatprep.subr.bf16.mxu0 %v489
  %521 = vmatpush1.bf16.msra.mxu0 %v488
  %522 = vmatprep.subr.bf16.mxu0 %v491
  %523 = vmatpush1.bf16.msra.mxu0 %v490
  %524 = vmatprep.subr.bf16.mxu0 %v493
  %525 = vmatpush1.bf16.msra.mxu0 %v492
  %526 = vmatprep.subr.bf16.mxu0 %v495
  %527 = vmatpush1.bf16.msra.mxu0 %v494
  %528 = vmatprep.subr.bf16.mxu0 %v497
  %529 = vmatpush1.bf16.msra.mxu0 %v496
  %530 = vmatprep.subr.bf16.mxu0 %v499
  %531 = vmatpush1.bf16.msra.mxu0 %v498
  %532 = vmatprep.subr.bf16.mxu0 %v501
  %533 = vmatpush1.bf16.msra.mxu0 %v500
  %534 = vmatprep.subr.bf16.mxu0 %v503
  %535 = vmatpush1.bf16.msra.mxu0 %v502
  %536 = vmatprep.subr.bf16.mxu0 0
  %537 = vmatpush1.bf16.msra.mxu0 0
  %538 = vmatprep.subr.bf16.mxu0 0
  %539 = vmatpush1.bf16.msra.mxu0 0
  %540 = vmatprep.subr.bf16.mxu0 0
  %541 = vmatpush1.bf16.msra.mxu0 0
  %542 = vmatprep.subr.bf16.mxu0 0
  %543 = vmatpush1.bf16.msra.mxu0 0
  %544 = vmatprep.subr.bf16.mxu0 0
  %545 = vmatpush1.bf16.msra.mxu0 0
  %546 = vmatprep.subr.bf16.mxu0 0
  %547 = vmatpush1.bf16.msra.mxu0 0
  %548 = vmatprep.subr.bf16.mxu0 0
  %549 = vmatpush1.bf16.msra.mxu0 0
  %550 = vmatprep.subr.bf16.mxu0 0
  %551 = vmatpush1.bf16.msra.mxu0 0
  %552 = vmatprep.mubr.bf16.mxu0 0
  %553 = vmatmul.mubr.bf16.gmra.mrb[0].mxu0 %v37
  %v554 = vpop.f32.mrb[0].mxu0
  %v555 = vadd.f32 0.0, %v554
  %v556 = vpop.f32.mrb[0].mxu0
  %v557 = vadd.f32 0.0, %v556
  %v558 = vpop.f32.mrb[0].mxu0
  %v559 = vadd.f32 0.0, %v558
  %v560 = vpop.f32.mrb[0].mxu0
  %v561 = vadd.f32 0.0, %v560
  %562 = vmatprep.mubr.bf16.mxu0 0
  %563 = vmatmul.mubr.bf16.gmra.mrb[0].mxu0 %v38
  %v564 = vpop.f32.mrb[0].mxu0
  %v565 = vadd.f32 0.0, %v564
  %v566 = vpop.f32.mrb[0].mxu0
  %v567 = vadd.f32 0.0, %v566
  %v568 = vpop.f32.mrb[0].mxu0
  %v569 = vadd.f32 0.0, %v568
  %v570 = vpop.f32.mrb[0].mxu0
  %v571 = vadd.f32 0.0, %v570
  %572 = vdwg.mxu0
  %v589 = vunpack.c.l.b16 %v407
  %v590 = vunpack.c.h.b16 %v407
  %v591 = vunpack.c.l.b16 %v408
  %v592 = vunpack.c.h.b16 %v408
  %v593 = vunpack.c.l.b16 %v409
  %v594 = vunpack.c.h.b16 %v409
  %v595 = vunpack.c.l.b16 %v410
  %v596 = vunpack.c.h.b16 %v410
  %v597 = vunpack.c.l.b16 %v411
  %v598 = vunpack.c.h.b16 %v411
  %v599 = vunpack.c.l.b16 %v412
  %v600 = vunpack.c.h.b16 %v412
  %v601 = vunpack.c.l.b16 %v413
  %v602 = vunpack.c.h.b16 %v413
  %v603 = vunpack.c.l.b16 %v414
  %v604 = vunpack.c.h.b16 %v414
  %v605 = vunpack.c.l.b16 %v415
  %v606 = vunpack.c.h.b16 %v415
  %v607 = vunpack.c.l.b16 %v416
  %v608 = vunpack.c.h.b16 %v416
  %v609 = vunpack.c.l.b16 %v417
  %v610 = vunpack.c.h.b16 %v417
  %v611 = vunpack.c.l.b16 %v418
  %v612 = vunpack.c.h.b16 %v418
  %v613 = vunpack.c.l.b16 %v419
  %v614 = vunpack.c.h.b16 %v419
  %v615 = vunpack.c.l.b16 %v420
  %v616 = vunpack.c.h.b16 %v420
  %v617 = vunpack.c.l.b16 %v421
  %v618 = vunpack.c.h.b16 %v421
  %v619 = vunpack.c.l.b16 %v422
  %v620 = vunpack.c.h.b16 %v422
  %v621 = vpack.c.b16 %v591, %v589
  %v622 = vpack.c.b16 %v592, %v590
  %v623 = vpack.c.b16 %v595, %v593
  %v624 = vpack.c.b16 %v596, %v594
  %v625 = vpack.c.b16 %v599, %v597
  %v626 = vpack.c.b16 %v600, %v598
  %v627 = vpack.c.b16 %v603, %v601
  %v628 = vpack.c.b16 %v604, %v602
  %v629 = vpack.c.b16 %v607, %v605
  %v630 = vpack.c.b16 %v608, %v606
  %v631 = vpack.c.b16 %v611, %v609
  %v632 = vpack.c.b16 %v612, %v610
  %v633 = vpack.c.b16 %v615, %v613
  %v634 = vpack.c.b16 %v616, %v614
  %v635 = vpack.c.b16 %v619, %v617
  %v636 = vpack.c.b16 %v620, %v618
  %653 = vmatprep.subr.bf16.mxu0 %v622
  %654 = vmatpush1.bf16.msra.mxu0 %v621
  %655 = vmatprep.subr.bf16.mxu0 %v624
  %656 = vmatpush1.bf16.msra.mxu0 %v623
  %657 = vmatprep.subr.bf16.mxu0 %v626
  %658 = vmatpush1.bf16.msra.mxu0 %v625
  %659 = vmatprep.subr.bf16.mxu0 %v628
  %660 = vmatpush1.bf16.msra.mxu0 %v627
  %661 = vmatprep.subr.bf16.mxu0 %v630
  %662 = vmatpush1.bf16.msra.mxu0 %v629
  %663 = vmatprep.subr.bf16.mxu0 %v632
  %664 = vmatpush1.bf16.msra.mxu0 %v631
  %665 = vmatprep.subr.bf16.mxu0 %v634
  %666 = vmatpush1.bf16.msra.mxu0 %v633
  %667 = vmatprep.subr.bf16.mxu0 %v636
  %668 = vmatpush1.bf16.msra.mxu0 %v635
  %669 = vmatprep.subr.bf16.mxu0 0
  %670 = vmatpush1.bf16.msra.mxu0 0
  %671 = vmatprep.subr.bf16.mxu0 0
  %672 = vmatpush1.bf16.msra.mxu0 0
  %673 = vmatprep.subr.bf16.mxu0 0
  %674 = vmatpush1.bf16.msra.mxu0 0
  %675 = vmatprep.subr.bf16.mxu0 0
  %676 = vmatpush1.bf16.msra.mxu0 0
  %677 = vmatprep.subr.bf16.mxu0 0
  %678 = vmatpush1.bf16.msra.mxu0 0
  %679 = vmatprep.subr.bf16.mxu0 0
  %680 = vmatpush1.bf16.msra.mxu0 0
  %681 = vmatprep.subr.bf16.mxu0 0
  %682 = vmatpush1.bf16.msra.mxu0 0
  %683 = vmatprep.subr.bf16.mxu0 0
  %684 = vmatpush1.bf16.msra.mxu0 0
  %685 = vmatprep.mubr.bf16.mxu0 0
  %686 = vmatmul.mubr.bf16.gmra.mrb[0].mxu0 %v31
  %v687 = vpop.f32.mrb[0].mxu0
  %v688 = vadd.f32 %v555, %v687
  %v689 = vpop.f32.mrb[0].mxu0
  %v690 = vadd.f32 %v557, %v689
  %v691 = vpop.f32.mrb[0].mxu0
  %v692 = vadd.f32 %v559, %v691
  %v693 = vpop.f32.mrb[0].mxu0
  %v694 = vadd.f32 %v561, %v693
  %695 = vmatprep.mubr.bf16.mxu0 0
  %696 = vmatmul.mubr.bf16.gmra.mrb[0].mxu0 %v32
  %v697 = vpop.f32.mrb[0].mxu0
  %v698 = vadd.f32 %v565, %v697
  %v699 = vpop.f32.mrb[0].mxu0
  %v700 = vadd.f32 %v567, %v699
  %v701 = vpop.f32.mrb[0].mxu0
  %v702 = vadd.f32 %v569, %v701
  %v703 = vpop.f32.mrb[0].mxu0
  %v704 = vadd.f32 %v571, %v703
  %705 = vdwg.mxu0
  %s706 = scalar_lea.vmem %s2, 1
  %v707 = vld [vmem:[%s706] ss:$4 sm:$0x3]
  %v709 = vlaneseq
  %v710 = vshrl.u32 %v709, 7
  %v711 = vsub.s32 0, %v710
  %v712 = vrot.slane %v707, %v711
  %v713 = vlaneseq
  %v714 = vshrl.u32 %v713, 7
  %v715 = vsub.s32 1, %v714
  %v716 = vrot.slane %v707, %v715
  %v719 = vadd.f32 %v688, %v712
  %v720 = vadd.f32 %v690, %v716
  %v721 = vadd.f32 %v692, %v712
  %v722 = vadd.f32 %v694, %v716
  %v723 = vadd.f32 %v698, %v712
  %v724 = vadd.f32 %v700, %v716
  %v725 = vadd.f32 %v702, %v712
  %v726 = vadd.f32 %v704, %v716
  %s727 = scalar_lea.vmem %s2, 3
  %v728 = vld [vmem:[%s727] ss:$4 sm:$0x3]
  %v730 = vlaneseq
  %v731 = vshrl.u32 %v730, 7
  %v732 = vsub.s32 0, %v731
  %v733 = vrot.slane %v728, %v732
  %v734 = vlaneseq
  %v735 = vshrl.u32 %v734, 7
  %v736 = vsub.s32 1, %v735
  %v737 = vrot.slane %v728, %v736
  %v740 = vmul.f32 %v52, %v733
  %v741 = vmul.f32 %v52, %v737
  %v742 = vmul.f32 %v53, %v733
  %v743 = vmul.f32 %v53, %v737
  %v744 = vadd.f32 %v719, %v740
  %v745 = vadd.f32 %v720, %v741
  %v746 = vadd.f32 %v721, %v742
  %v747 = vadd.f32 %v722, %v743
  %v748 = vadd.f32 %v723, %v740
  %v749 = vadd.f32 %v724, %v741
  %v750 = vadd.f32 %v725, %v742
  %v751 = vadd.f32 %v726, %v743
  %v752 = vmax.f32 %v744, 0.0
  %v753 = vmax.f32 %v745, 0.0
  %v754 = vmax.f32 %v746, 0.0
  %v755 = vmax.f32 %v747, 0.0
  %v756 = vmax.f32 %v748, 0.0
  %v757 = vmax.f32 %v749, 0.0
  %v758 = vmax.f32 %v750, 0.0
  %v759 = vmax.f32 %v751, 0.0
  %s760 = scalar_lea.vmem [#allocation2], 96
  %761 = vst [vmem:[%s760] sm:$0xff] %v398
  %762 = vst [vmem:[%s760 + $0x8] sm:$0xff] %v399
  %763 = vst [vmem:[%s760 + $0x10] sm:$0xff] %v400
  %764 = vst [vmem:[%s760 + $0x18] sm:$0xff] %v401
  %765 = vst [vmem:[%s760 + $0x30] sm:$0xff] %v402
  %766 = vst [vmem:[%s760 + $0x38] sm:$0xff] %v403
  %767 = vst [vmem:[%s760 + $0x40] sm:$0xff] %v404
  %768 = vst [vmem:[%s760 + $0x48] sm:$0xff] %v405
  %vm777 = vcmask 1040384
  %v778 = vrot.slane %v752, 7
  %v779 = vrot.slane %v753, 7
  %v780 = vrot.slane %v754, 7
  %v781 = vsel %vm777, %v778, %v780
  %v782 = vrot.slane %v755, 7
  %v783 = vsel %vm777, %v779, %v782
  %v784 = vrot.slane %v756, 7
  %v785 = vrot.slane %v757, 7
  %v786 = vrot.slane %v758, 7
  %v787 = vsel %vm777, %v784, %v786
  %v788 = vrot.slane %v759, 7
  %v789 = vsel %vm777, %v785, %v788
  %802 = vst [vmem:[#allocation2] sm:$0xfe] %v778
  %803 = vst [vmem:[#allocation2 + $0x8] sm:$0xfe] %v779
  %804 = vst [vmem:[#allocation2 + $0x10] sm:$0xff] %v781
  %805 = vst [vmem:[#allocation2 + $0x18] sm:$0xff] %v783
  %806 = vst [vmem:[#allocation2 + $0x20] sm:$0x1] %v780
  %807 = vst [vmem:[#allocation2 + $0x28] sm:$0x1] %v782
  %808 = vst [vmem:[#allocation2 + $0x30] sm:$0xfe] %v784
  %809 = vst [vmem:[#allocation2 + $0x38] sm:$0xfe] %v785
  %810 = vst [vmem:[#allocation2 + $0x40] sm:$0xff] %v787
  %811 = vst [vmem:[#allocation2 + $0x48] sm:$0xff] %v789
  %812 = vst [vmem:[#allocation2 + $0x50] sm:$0x1] %v786
  %813 = vst [vmem:[#allocation2 + $0x58] sm:$0x1] %v788
  %v814 = vlaneseq
  %vm815 = vcmp.ge.s32.totalorder %v814, 0
  %vm816 = vcmp.lt.s32.totalorder %v814, 256
  %vm817 = vmand %vm815, %vm816
  %818 = vst.msk [vmem:[#allocation2] ss:$8 sm:$0x3] %vm817, 0.0
  %819 = vst.msk [vmem:[#allocation2] ss:$8 sm:$0x0] %vm817, 0.0
  %s820 = scalar_lea.vmem [#allocation2], 48
  %821 = vst.msk [vmem:[%s820] ss:$8 sm:$0x3] %vm817, 0.0
  %822 = vst.msk [vmem:[%s820] ss:$8 sm:$0x0] %vm817, 0.0
  %s823 = scalar_lea.vmem %s760, 32 [#allocation2]
  %824 = vst.msk [vmem:[%s823] ss:$8 sm:$0x3] %vm817, 0.0
  %825 = vst.msk [vmem:[%s823] ss:$8 sm:$0x0] %vm817, 0.0
  %s826 = scalar_lea.vmem %s760, 80 [#allocation2]
  %827 = vst.msk [vmem:[%s826] ss:$8 sm:$0x3] %vm817, 0.0
  %828 = vst.msk [vmem:[%s826] ss:$8 sm:$0x0] %vm817, 0.0
  %v829 = vld [vmem:[#allocation2] sm:$0xff]
  %v830 = vld [vmem:[#allocation2 + $0x8] sm:$0xff]
  %v831 = vld [vmem:[#allocation2 + $0x10] sm:$0xff]
  %v832 = vld [vmem:[#allocation2 + $0x18] sm:$0xff]
  %v833 = vld [vmem:[#allocation2 + $0x30] sm:$0xff]
  %v834 = vld [vmem:[#allocation2 + $0x38] sm:$0xff]
  %v835 = vld [vmem:[#allocation2 + $0x40] sm:$0xff]
  %v836 = vld [vmem:[#allocation2 + $0x48] sm:$0xff]
  %v837 = vpack.c.bf16 %v831, %v829
  %v838 = vpack.c.bf16 %v832, %v830
  %v839 = vpack.c.bf16 %v835, %v833
  %v840 = vpack.c.bf16 %v836, %v834
  %v841 = vld [vmem:[%s760] sm:$0xff]
  %v842 = vld [vmem:[%s760 + $0x8] sm:$0xff]
  %v843 = vld [vmem:[%s760 + $0x10] sm:$0xff]
  %v844 = vld [vmem:[%s760 + $0x18] sm:$0xff]
  %v845 = vld [vmem:[%s760 + $0x30] sm:$0xff]
  %v846 = vld [vmem:[%s760 + $0x38] sm:$0xff]
  %v847 = vld [vmem:[%s760 + $0x40] sm:$0xff]
  %v848 = vld [vmem:[%s760 + $0x48] sm:$0xff]
  %v849 = vpack.c.bf16 %v843, %v841
  %v850 = vpack.c.bf16 %v844, %v842
  %v851 = vpack.c.bf16 %v847, %v845
  %v852 = vpack.c.bf16 %v848, %v846
  %v853 = vld [vmem:[#allocation2] sm:$0xfe]
  %v854 = vld [vmem:[#allocation2 + $0x8] sm:$0xfe]
  %v855 = vld [vmem:[#allocation2 + $0x20] sm:$0x1]
  %v856 = vld [vmem:[#allocation2 + $0x28] sm:$0x1]
  %v857 = vld [vmem:[#allocation2 + $0x30] sm:$0xfe]
  %v858 = vld [vmem:[#allocation2 + $0x38] sm:$0xfe]
  %v859 = vld [vmem:[#allocation2 + $0x50] sm:$0x1]
  %v860 = vld [vmem:[#allocation2 + $0x58] sm:$0x1]
  %v861 = vpack.c.bf16 %v831, %v853
  %v862 = vpack.c.bf16 %v832, %v854
  %v863 = vpack.c.bf16 %v855, %v855
  %v864 = vpack.c.bf16 %v856, %v856
  %v865 = vpack.c.bf16 %v835, %v857
  %v866 = vpack.c.bf16 %v836, %v858
  %v867 = vpack.c.bf16 %v859, %v859
  %v868 = vpack.c.bf16 %v860, %v860
  %vm869 = vsmask.f32 7424
  %v871 = vshrl.u32 %v861, 16
  %v873 = vshll.u32 %v861, 16
  %v875 = vrot.slane %v873, 1
  %v876 = vor.u32 %v871, %v875
  %v878 = vshll.u32 %v863, 16
  %v880 = vrot.slane %v878, 1
  %v881 = vsel %vm869, %v876, %v880
  %v883 = vshrl.u32 %v862, 16
  %v885 = vshll.u32 %v862, 16
  %v887 = vrot.slane %v885, 1
  %v888 = vor.u32 %v883, %v887
  %v890 = vshll.u32 %v864, 16
  %v892 = vrot.slane %v890, 1
  %v893 = vsel %vm869, %v888, %v892
  %v895 = vshrl.u32 %v865, 16
  %v897 = vshll.u32 %v865, 16
  %v899 = vrot.slane %v897, 1
  %v900 = vor.u32 %v895, %v899
  %v902 = vshll.u32 %v867, 16
  %v904 = vrot.slane %v902, 1
  %v905 = vsel %vm869, %v900, %v904
  %v907 = vshrl.u32 %v866, 16
  %v909 = vshll.u32 %v866, 16
  %v911 = vrot.slane %v909, 1
  %v912 = vor.u32 %v907, %v911
  %v914 = vshll.u32 %v868, 16
  %v916 = vrot.slane %v914, 1
  %v917 = vsel %vm869, %v912, %v916
  %v922 = vld [vmem:[%s760] sm:$0xfe]
  %v923 = vld [vmem:[%s760 + $0x8] sm:$0xfe]
  %v924 = vld [vmem:[%s760 + $0x20] sm:$0x1]
  %v925 = vld [vmem:[%s760 + $0x28] sm:$0x1]
  %v926 = vld [vmem:[%s760 + $0x30] sm:$0xfe]
  %v927 = vld [vmem:[%s760 + $0x38] sm:$0xfe]
  %v928 = vld [vmem:[%s760 + $0x50] sm:$0x1]
  %v929 = vld [vmem:[%s760 + $0x58] sm:$0x1]
  %v930 = vpack.c.bf16 %v843, %v922
  %v931 = vpack.c.bf16 %v844, %v923
  %v932 = vpack.c.bf16 %v924, %v924
  %v933 = vpack.c.bf16 %v925, %v925
  %v934 = vpack.c.bf16 %v847, %v926
  %v935 = vpack.c.bf16 %v848, %v927
  %v936 = vpack.c.bf16 %v928, %v928
  %v937 = vpack.c.bf16 %v929, %v929
  %v939 = vshrl.u32 %v930, 16
  %v941 = vshll.u32 %v930, 16
  %v943 = vrot.slane %v941, 1
  %v944 = vor.u32 %v939, %v943
  %v946 = vshll.u32 %v932, 16
  %v948 = vrot.slane %v946, 1
  %v949 = vsel %vm869, %v944, %v948
  %v951 = vshrl.u32 %v931, 16
  %v953 = vshll.u32 %v931, 16
  %v955 = vrot.slane %v953, 1
  %v956 = vor.u32 %v951, %v955
  %v958 = vshll.u32 %v933, 16
  %v960 = vrot.slane %v958, 1
  %v961 = vsel %vm869, %v956, %v960
  %v963 = vshrl.u32 %v934, 16
  %v965 = vshll.u32 %v934, 16
  %v967 = vrot.slane %v965, 1
  %v968 = vor.u32 %v963, %v967
  %v970 = vshll.u32 %v936, 16
  %v972 = vrot.slane %v970, 1
  %v973 = vsel %vm869, %v968, %v972
  %v975 = vshrl.u32 %v935, 16
  %v977 = vshll.u32 %v935, 16
  %v979 = vrot.slane %v977, 1
  %v980 = vor.u32 %v975, %v979
  %v982 = vshll.u32 %v937, 16
  %v984 = vrot.slane %v982, 1
  %v985 = vsel %vm869, %v980, %v984
  %v990 = vld [vmem:[%s3] sm:$0xff]
  %v991 = vld [vmem:[%s3 + $0x8] sm:$0xff]
  %v992 = vld [vmem:[%s3 + $0x10] sm:$0xff]
  %v993 = vld [vmem:[%s3 + $0x18] sm:$0xff]
  %v994 = vld [vmem:[%s3 + $0x20] sm:$0xff]
  %v995 = vld [vmem:[%s3 + $0x28] sm:$0xff]
  %v996 = vld [vmem:[%s3 + $0x30] sm:$0xff]
  %v997 = vld [vmem:[%s3 + $0x38] sm:$0xff]
  %v998 = vld [vmem:[%s3 + $0x40] sm:$0xff]
  %v999 = vld [vmem:[%s3 + $0x48] sm:$0xff]
  %v1000 = vld [vmem:[%s3 + $0x50] sm:$0xff]
  %v1001 = vld [vmem:[%s3 + $0x58] sm:$0xff]
  %v1002 = vld [vmem:[%s3 + $0x60] sm:$0xff]
  %v1003 = vld [vmem:[%s3 + $0x68] sm:$0xff]
  %v1004 = vld [vmem:[%s3 + $0x70] sm:$0xff]
  %v1005 = vld [vmem:[%s3 + $0x78] sm:$0xff]
  %v1006 = vld [vmem:[%s3 + $0x80] sm:$0xff]
  %v1007 = vld [vmem:[%s3 + $0x88] sm:$0xff]
  %v1008 = vld [vmem:[%s3 + $0x90] sm:$0xff]
  %v1009 = vld [vmem:[%s3 + $0x98] sm:$0xff]
  %v1010 = vld [vmem:[%s3 + $0xa0] sm:$0xff]
  %v1011 = vld [vmem:[%s3 + $0xa8] sm:$0xff]
  %v1012 = vld [vmem:[%s3 + $0xb0] sm:$0xff]
  %v1013 = vld [vmem:[%s3 + $0xb8] sm:$0xff]
  %v1014 = vld [vmem:[%s3 + $0xc0] sm:$0xff]
  %v1015 = vld [vmem:[%s3 + $0xc8] sm:$0xff]
  %v1016 = vld [vmem:[%s3 + $0xd0] sm:$0xff]
  %v1017 = vld [vmem:[%s3 + $0xd8] sm:$0xff]
  %v1018 = vld [vmem:[%s3 + $0xe0] sm:$0xff]
  %v1019 = vld [vmem:[%s3 + $0xe8] sm:$0xff]
  %v1020 = vld [vmem:[%s3 + $0xf0] sm:$0xff]
  %v1021 = vld [vmem:[%s3 + $0xf8] sm:$0xff]
  %s1022 = scalar_lea.vmem %s3, 256
  %v1023 = vld [vmem:[%s1022] sm:$0xff]
  %v1024 = vld [vmem:[%s1022 + $0x8] sm:$0xff]
  %v1025 = vld [vmem:[%s1022 + $0x10] sm:$0xff]
  %v1026 = vld [vmem:[%s1022 + $0x18] sm:$0xff]
  %v1027 = vld [vmem:[%s1022 + $0x20] sm:$0xff]
  %v1028 = vld [vmem:[%s1022 + $0x28] sm:$0xff]
  %v1029 = vld [vmem:[%s1022 + $0x30] sm:$0xff]
  %v1030 = vld [vmem:[%s1022 + $0x38] sm:$0xff]
  %v1031 = vld [vmem:[%s1022 + $0x40] sm:$0xff]
  %v1032 = vld [vmem:[%s1022 + $0x48] sm:$0xff]
  %v1033 = vld [vmem:[%s1022 + $0x50] sm:$0xff]
  %v1034 = vld [vmem:[%s1022 + $0x58] sm:$0xff]
  %v1035 = vld [vmem:[%s1022 + $0x60] sm:$0xff]
  %v1036 = vld [vmem:[%s1022 + $0x68] sm:$0xff]
  %v1037 = vld [vmem:[%s1022 + $0x70] sm:$0xff]
  %v1038 = vld [vmem:[%s1022 + $0x78] sm:$0xff]
  %v1039 = vld [vmem:[%s1022 + $0x80] sm:$0xff]
  %v1040 = vld [vmem:[%s1022 + $0x88] sm:$0xff]
  %v1041 = vld [vmem:[%s1022 + $0x90] sm:$0xff]
  %v1042 = vld [vmem:[%s1022 + $0x98] sm:$0xff]
  %v1043 = vld [vmem:[%s1022 + $0xa0] sm:$0xff]
  %v1044 = vld [vmem:[%s1022 + $0xa8] sm:$0xff]
  %v1045 = vld [vmem:[%s1022 + $0xb0] sm:$0xff]
  %v1046 = vld [vmem:[%s1022 + $0xb8] sm:$0xff]
  %v1047 = vld [vmem:[%s1022 + $0xc0] sm:$0xff]
  %v1048 = vld [vmem:[%s1022 + $0xc8] sm:$0xff]
  %v1049 = vld [vmem:[%s1022 + $0xd0] sm:$0xff]
  %v1050 = vld [vmem:[%s1022 + $0xd8] sm:$0xff]
  %v1051 = vld [vmem:[%s1022 + $0xe0] sm:$0xff]
  %v1052 = vld [vmem:[%s1022 + $0xe8] sm:$0xff]
  %v1053 = vld [vmem:[%s1022 + $0xf0] sm:$0xff]
  %v1054 = vld [vmem:[%s1022 + $0xf8] sm:$0xff]
  %s1055 = scalar_lea.vmem %s3, 512
  %v1056 = vld [vmem:[%s1055] sm:$0xff]
  %v1057 = vld [vmem:[%s1055 + $0x8] sm:$0xff]
  %v1058 = vld [vmem:[%s1055 + $0x10] sm:$0xff]
  %v1059 = vld [vmem:[%s1055 + $0x18] sm:$0xff]
  %v1060 = vld [vmem:[%s1055 + $0x20] sm:$0xff]
  %v1061 = vld [vmem:[%s1055 + $0x28] sm:$0xff]
  %v1062 = vld [vmem:[%s1055 + $0x30] sm:$0xff]
  %v1063 = vld [vmem:[%s1055 + $0x38] sm:$0xff]
  %v1064 = vld [vmem:[%s1055 + $0x40] sm:$0xff]
  %v1065 = vld [vmem:[%s1055 + $0x48] sm:$0xff]
  %v1066 = vld [vmem:[%s1055 + $0x50] sm:$0xff]
  %v1067 = vld [vmem:[%s1055 + $0x58] sm:$0xff]
  %v1068 = vld [vmem:[%s1055 + $0x60] sm:$0xff]
  %v1069 = vld [vmem:[%s1055 + $0x68] sm:$0xff]
  %v1070 = vld [vmem:[%s1055 + $0x70] sm:$0xff]
  %v1071 = vld [vmem:[%s1055 + $0x78] sm:$0xff]
  %v1072 = vld [vmem:[%s1055 + $0x80] sm:$0xff]
  %v1073 = vld [vmem:[%s1055 + $0x88] sm:$0xff]
  %v1074 = vld [vmem:[%s1055 + $0x90] sm:$0xff]
  %v1075 = vld [vmem:[%s1055 + $0x98] sm:$0xff]
  %v1076 = vld [vmem:[%s1055 + $0xa0] sm:$0xff]
  %v1077 = vld [vmem:[%s1055 + $0xa8] sm:$0xff]
  %v1078 = vld [vmem:[%s1055 + $0xb0] sm:$0xff]
  %v1079 = vld [vmem:[%s1055 + $0xb8] sm:$0xff]
  %v1080 = vld [vmem:[%s1055 + $0xc0] sm:$0xff]
  %v1081 = vld [vmem:[%s1055 + $0xc8] sm:$0xff]
  %v1082 = vld [vmem:[%s1055 + $0xd0] sm:$0xff]
  %v1083 = vld [vmem:[%s1055 + $0xd8] sm:$0xff]
  %v1084 = vld [vmem:[%s1055 + $0xe0] sm:$0xff]
  %v1085 = vld [vmem:[%s1055 + $0xe8] sm:$0xff]
  %v1086 = vld [vmem:[%s1055 + $0xf0] sm:$0xff]
  %v1087 = vld [vmem:[%s1055 + $0xf8] sm:$0xff]
  %v1088 = vld [vmem:[%s4] sm:$0x3]
  %v1121 = vunpack.c.l.b16 %v1023
  %v1122 = vunpack.c.h.b16 %v1023
  %v1123 = vunpack.c.l.b16 %v1024
  %v1124 = vunpack.c.h.b16 %v1024
  %v1125 = vunpack.c.l.b16 %v1025
  %v1126 = vunpack.c.h.b16 %v1025
  %v1127 = vunpack.c.l.b16 %v1026
  %v1128 = vunpack.c.h.b16 %v1026
  %v1129 = vunpack.c.l.b16 %v1027
  %v1130 = vunpack.c.h.b16 %v1027
  %v1131 = vunpack.c.l.b16 %v1028
  %v1132 = vunpack.c.h.b16 %v1028
  %v1133 = vunpack.c.l.b16 %v1029
  %v1134 = vunpack.c.h.b16 %v1029
  %v1135 = vunpack.c.l.b16 %v1030
  %v1136 = vunpack.c.h.b16 %v1030
  %v1137 = vunpack.c.l.b16 %v1031
  %v1138 = vunpack.c.h.b16 %v1031
  %v1139 = vunpack.c.l.b16 %v1032
  %v1140 = vunpack.c.h.b16 %v1032
  %v1141 = vunpack.c.l.b16 %v1033
  %v1142 = vunpack.c.h.b16 %v1033
  %v1143 = vunpack.c.l.b16 %v1034
  %v1144 = vunpack.c.h.b16 %v1034
  %v1145 = vunpack.c.l.b16 %v1035
  %v1146 = vunpack.c.h.b16 %v1035
  %v1147 = vunpack.c.l.b16 %v1036
  %v1148 = vunpack.c.h.b16 %v1036
  %v1149 = vunpack.c.l.b16 %v1037
  %v1150 = vunpack.c.h.b16 %v1037
  %v1151 = vunpack.c.l.b16 %v1038
  %v1152 = vunpack.c.h.b16 %v1038
  %v1153 = vunpack.c.l.b16 %v1039
  %v1154 = vunpack.c.h.b16 %v1039
  %v1155 = vunpack.c.l.b16 %v1040
  %v1156 = vunpack.c.h.b16 %v1040
  %v1157 = vunpack.c.l.b16 %v1041
  %v1158 = vunpack.c.h.b16 %v1041
  %v1159 = vunpack.c.l.b16 %v1042
  %v1160 = vunpack.c.h.b16 %v1042
  %v1161 = vunpack.c.l.b16 %v1043
  %v1162 = vunpack.c.h.b16 %v1043
  %v1163 = vunpack.c.l.b16 %v1044
  %v1164 = vunpack.c.h.b16 %v1044
  %v1165 = vunpack.c.l.b16 %v1045
  %v1166 = vunpack.c.h.b16 %v1045
  %v1167 = vunpack.c.l.b16 %v1046
  %v1168 = vunpack.c.h.b16 %v1046
  %v1169 = vunpack.c.l.b16 %v1047
  %v1170 = vunpack.c.h.b16 %v1047
  %v1171 = vunpack.c.l.b16 %v1048
  %v1172 = vunpack.c.h.b16 %v1048
  %v1173 = vunpack.c.l.b16 %v1049
  %v1174 = vunpack.c.h.b16 %v1049
  %v1175 = vunpack.c.l.b16 %v1050
  %v1176 = vunpack.c.h.b16 %v1050
  %v1177 = vunpack.c.l.b16 %v1051
  %v1178 = vunpack.c.h.b16 %v1051
  %v1179 = vunpack.c.l.b16 %v1052
  %v1180 = vunpack.c.h.b16 %v1052
  %v1181 = vunpack.c.l.b16 %v1053
  %v1182 = vunpack.c.h.b16 %v1053
  %v1183 = vunpack.c.l.b16 %v1054
  %v1184 = vunpack.c.h.b16 %v1054
  %v1185 = vpack.c.b16 %v1123, %v1121
  %v1186 = vpack.c.b16 %v1124, %v1122
  %v1187 = vpack.c.b16 %v1127, %v1125
  %v1188 = vpack.c.b16 %v1128, %v1126
  %v1189 = vpack.c.b16 %v1131, %v1129
  %v1190 = vpack.c.b16 %v1132, %v1130
  %v1191 = vpack.c.b16 %v1135, %v1133
  %v1192 = vpack.c.b16 %v1136, %v1134
  %v1193 = vpack.c.b16 %v1139, %v1137
  %v1194 = vpack.c.b16 %v1140, %v1138
  %v1195 = vpack.c.b16 %v1143, %v1141
  %v1196 = vpack.c.b16 %v1144, %v1142
  %v1197 = vpack.c.b16 %v1147, %v1145
  %v1198 = vpack.c.b16 %v1148, %v1146
  %v1199 = vpack.c.b16 %v1151, %v1149
  %v1200 = vpack.c.b16 %v1152, %v1150
  %v1201 = vpack.c.b16 %v1155, %v1153
  %v1202 = vpack.c.b16 %v1156, %v1154
  %v1203 = vpack.c.b16 %v1159, %v1157
  %v1204 = vpack.c.b16 %v1160, %v1158
  %v1205 = vpack.c.b16 %v1163, %v1161
  %v1206 = vpack.c.b16 %v1164, %v1162
  %v1207 = vpack.c.b16 %v1167, %v1165
  %v1208 = vpack.c.b16 %v1168, %v1166
  %v1209 = vpack.c.b16 %v1171, %v1169
  %v1210 = vpack.c.b16 %v1172, %v1170
  %v1211 = vpack.c.b16 %v1175, %v1173
  %v1212 = vpack.c.b16 %v1176, %v1174
  %v1213 = vpack.c.b16 %v1179, %v1177
  %v1214 = vpack.c.b16 %v1180, %v1178
  %v1215 = vpack.c.b16 %v1183, %v1181
  %v1216 = vpack.c.b16 %v1184, %v1182
  %1249 = vmatprep.subr.bf16.mxu0 %v1186
  %1250 = vmatpush1.bf16.msra.mxu0 %v1185
  %1251 = vmatprep.subr.bf16.mxu0 %v1188
  %1252 = vmatpush1.bf16.msra.mxu0 %v1187
  %1253 = vmatprep.subr.bf16.mxu0 %v1190
  %1254 = vmatpush1.bf16.msra.mxu0 %v1189
  %1255 = vmatprep.subr.bf16.mxu0 %v1192
  %1256 = vmatpush1.bf16.msra.mxu0 %v1191
  %1257 = vmatprep.subr.bf16.mxu0 %v1194
  %1258 = vmatpush1.bf16.msra.mxu0 %v1193
  %1259 = vmatprep.subr.bf16.mxu0 %v1196
  %1260 = vmatpush1.bf16.msra.mxu0 %v1195
  %1261 = vmatprep.subr.bf16.mxu0 %v1198
  %1262 = vmatpush1.bf16.msra.mxu0 %v1197
  %1263 = vmatprep.subr.bf16.mxu0 %v1200
  %1264 = vmatpush1.bf16.msra.mxu0 %v1199
  %1265 = vmatprep.subr.bf16.mxu0 %v1202
  %1266 = vmatpush1.bf16.msra.mxu0 %v1201
  %1267 = vmatprep.subr.bf16.mxu0 %v1204
  %1268 = vmatpush1.bf16.msra.mxu0 %v1203
  %1269 = vmatprep.subr.bf16.mxu0 %v1206
  %1270 = vmatpush1.bf16.msra.mxu0 %v1205
  %1271 = vmatprep.subr.bf16.mxu0 %v1208
  %1272 = vmatpush1.bf16.msra.mxu0 %v1207
  %1273 = vmatprep.subr.bf16.mxu0 %v1210
  %1274 = vmatpush1.bf16.msra.mxu0 %v1209
  %1275 = vmatprep.subr.bf16.mxu0 %v1212
  %1276 = vmatpush1.bf16.msra.mxu0 %v1211
  %1277 = vmatprep.subr.bf16.mxu0 %v1214
  %1278 = vmatpush1.bf16.msra.mxu0 %v1213
  %1279 = vmatprep.subr.bf16.mxu0 %v1216
  %1280 = vmatpush1.bf16.msra.mxu0 %v1215
  %1281 = vmatprep.mubr.bf16.mxu0 %v850
  %1282 = vmatmul.mubr.bf16.gmra.mrb[0].mxu0 %v849
  %v1283 = vpop.f32.mrb[0].mxu0
  %v1284 = vadd.f32 0.0, %v1283
  %v1285 = vpop.f32.mrb[0].mxu0
  %v1286 = vadd.f32 0.0, %v1285
  %v1287 = vpop.f32.mrb[0].mxu0
  %v1288 = vadd.f32 0.0, %v1287
  %v1289 = vpop.f32.mrb[0].mxu0
  %v1290 = vadd.f32 0.0, %v1289
  %1291 = vmatprep.mubr.bf16.mxu0 %v852
  %1292 = vmatmul.mubr.bf16.gmra.mrb[0].mxu0 %v851
  %v1293 = vpop.f32.mrb[0].mxu0
  %v1294 = vadd.f32 0.0, %v1293
  %v1295 = vpop.f32.mrb[0].mxu0
  %v1296 = vadd.f32 0.0, %v1295
  %v1297 = vpop.f32.mrb[0].mxu0
  %v1298 = vadd.f32 0.0, %v1297
  %v1299 = vpop.f32.mrb[0].mxu0
  %v1300 = vadd.f32 0.0, %v1299
  %1301 = vdwg.mxu0
  %v1334 = vunpack.c.l.b16 %v990
  %v1335 = vunpack.c.h.b16 %v990
  %v1336 = vunpack.c.l.b16 %v991
  %v1337 = vunpack.c.h.b16 %v991
  %v1338 = vunpack.c.l.b16 %v992
  %v1339 = vunpack.c.h.b16 %v992
  %v1340 = vunpack.c.l.b16 %v993
  %v1341 = vunpack.c.h.b16 %v993
  %v1342 = vunpack.c.l.b16 %v994
  %v1343 = vunpack.c.h.b16 %v994
  %v1344 = vunpack.c.l.b16 %v995
  %v1345 = vunpack.c.h.b16 %v995
  %v1346 = vunpack.c.l.b16 %v996
  %v1347 = vunpack.c.h.b16 %v996
  %v1348 = vunpack.c.l.b16 %v997
  %v1349 = vunpack.c.h.b16 %v997
  %v1350 = vunpack.c.l.b16 %v998
  %v1351 = vunpack.c.h.b16 %v998
  %v1352 = vunpack.c.l.b16 %v999
  %v1353 = vunpack.c.h.b16 %v999
  %v1354 = vunpack.c.l.b16 %v1000
  %v1355 = vunpack.c.h.b16 %v1000
  %v1356 = vunpack.c.l.b16 %v1001
  %v1357 = vunpack.c.h.b16 %v1001
  %v1358 = vunpack.c.l.b16 %v1002
  %v1359 = vunpack.c.h.b16 %v1002
  %v1360 = vunpack.c.l.b16 %v1003
  %v1361 = vunpack.c.h.b16 %v1003
  %v1362 = vunpack.c.l.b16 %v1004
  %v1363 = vunpack.c.h.b16 %v1004
  %v1364 = vunpack.c.l.b16 %v1005
  %v1365 = vunpack.c.h.b16 %v1005
  %v1366 = vunpack.c.l.b16 %v1006
  %v1367 = vunpack.c.h.b16 %v1006
  %v1368 = vunpack.c.l.b16 %v1007
  %v1369 = vunpack.c.h.b16 %v1007
  %v1370 = vunpack.c.l.b16 %v1008
  %v1371 = vunpack.c.h.b16 %v1008
  %v1372 = vunpack.c.l.b16 %v1009
  %v1373 = vunpack.c.h.b16 %v1009
  %v1374 = vunpack.c.l.b16 %v1010
  %v1375 = vunpack.c.h.b16 %v1010
  %v1376 = vunpack.c.l.b16 %v1011
  %v1377 = vunpack.c.h.b16 %v1011
  %v1378 = vunpack.c.l.b16 %v1012
  %v1379 = vunpack.c.h.b16 %v1012
  %v1380 = vunpack.c.l.b16 %v1013
  %v1381 = vunpack.c.h.b16 %v1013
  %v1382 = vunpack.c.l.b16 %v1014
  %v1383 = vunpack.c.h.b16 %v1014
  %v1384 = vunpack.c.l.b16 %v1015
  %v1385 = vunpack.c.h.b16 %v1015
  %v1386 = vunpack.c.l.b16 %v1016
  %v1387 = vunpack.c.h.b16 %v1016
  %v1388 = vunpack.c.l.b16 %v1017
  %v1389 = vunpack.c.h.b16 %v1017
  %v1390 = vunpack.c.l.b16 %v1018
  %v1391 = vunpack.c.h.b16 %v1018
  %v1392 = vunpack.c.l.b16 %v1019
  %v1393 = vunpack.c.h.b16 %v1019
  %v1394 = vunpack.c.l.b16 %v1020
  %v1395 = vunpack.c.h.b16 %v1020
  %v1396 = vunpack.c.l.b16 %v1021
  %v1397 = vunpack.c.h.b16 %v1021
  %v1398 = vpack.c.b16 %v1336, %v1334
  %v1399 = vpack.c.b16 %v1337, %v1335
  %v1400 = vpack.c.b16 %v1340, %v1338
  %v1401 = vpack.c.b16 %v1341, %v1339
  %v1402 = vpack.c.b16 %v1344, %v1342
  %v1403 = vpack.c.b16 %v1345, %v1343
  %v1404 = vpack.c.b16 %v1348, %v1346
  %v1405 = vpack.c.b16 %v1349, %v1347
  %v1406 = vpack.c.b16 %v1352, %v1350
  %v1407 = vpack.c.b16 %v1353, %v1351
  %v1408 = vpack.c.b16 %v1356, %v1354
  %v1409 = vpack.c.b16 %v1357, %v1355
  %v1410 = vpack.c.b16 %v1360, %v1358
  %v1411 = vpack.c.b16 %v1361, %v1359
  %v1412 = vpack.c.b16 %v1364, %v1362
  %v1413 = vpack.c.b16 %v1365, %v1363
  %v1414 = vpack.c.b16 %v1368, %v1366
  %v1415 = vpack.c.b16 %v1369, %v1367
  %v1416 = vpack.c.b16 %v1372, %v1370
  %v1417 = vpack.c.b16 %v1373, %v1371
  %v1418 = vpack.c.b16 %v1376, %v1374
  %v1419 = vpack.c.b16 %v1377, %v1375
  %v1420 = vpack.c.b16 %v1380, %v1378
  %v1421 = vpack.c.b16 %v1381, %v1379
  %v1422 = vpack.c.b16 %v1384, %v1382
  %v1423 = vpack.c.b16 %v1385, %v1383
  %v1424 = vpack.c.b16 %v1388, %v1386
  %v1425 = vpack.c.b16 %v1389, %v1387
  %v1426 = vpack.c.b16 %v1392, %v1390
  %v1427 = vpack.c.b16 %v1393, %v1391
  %v1428 = vpack.c.b16 %v1396, %v1394
  %v1429 = vpack.c.b16 %v1397, %v1395
  %1462 = vmatprep.subr.bf16.mxu0 %v1399
  %1463 = vmatpush1.bf16.msra.mxu0 %v1398
  %1464 = vmatprep.subr.bf16.mxu0 %v1401
  %1465 = vmatpush1.bf16.msra.mxu0 %v1400
  %1466 = vmatprep.subr.bf16.mxu0 %v1403
  %1467 = vmatpush1.bf16.msra.mxu0 %v1402
  %1468 = vmatprep.subr.bf16.mxu0 %v1405
  %1469 = vmatpush1.bf16.msra.mxu0 %v1404
  %1470 = vmatprep.subr.bf16.mxu0 %v1407
  %1471 = vmatpush1.bf16.msra.mxu0 %v1406
  %1472 = vmatprep.subr.bf16.mxu0 %v1409
  %1473 = vmatpush1.bf16.msra.mxu0 %v1408
  %1474 = vmatprep.subr.bf16.mxu0 %v1411
  %1475 = vmatpush1.bf16.msra.mxu0 %v1410
  %1476 = vmatprep.subr.bf16.mxu0 %v1413
  %1477 = vmatpush1.bf16.msra.mxu0 %v1412
  %1478 = vmatprep.subr.bf16.mxu0 %v1415
  %1479 = vmatpush1.bf16.msra.mxu0 %v1414
  %1480 = vmatprep.subr.bf16.mxu0 %v1417
  %1481 = vmatpush1.bf16.msra.mxu0 %v1416
  %1482 = vmatprep.subr.bf16.mxu0 %v1419
  %1483 = vmatpush1.bf16.msra.mxu0 %v1418
  %1484 = vmatprep.subr.bf16.mxu0 %v1421
  %1485 = vmatpush1.bf16.msra.mxu0 %v1420
  %1486 = vmatprep.subr.bf16.mxu0 %v1423
  %1487 = vmatpush1.bf16.msra.mxu0 %v1422
  %1488 = vmatprep.subr.bf16.mxu0 %v1425
  %1489 = vmatpush1.bf16.msra.mxu0 %v1424
  %1490 = vmatprep.subr.bf16.mxu0 %v1427
  %1491 = vmatpush1.bf16.msra.mxu0 %v1426
  %1492 = vmatprep.subr.bf16.mxu0 %v1429
  %1493 = vmatpush1.bf16.msra.mxu0 %v1428
  %1494 = vmatprep.mubr.bf16.mxu0 %v838
  %1495 = vmatmul.mubr.bf16.gmra.mrb[0].mxu0 %v837
  %v1496 = vpop.f32.mrb[0].mxu0
  %v1497 = vadd.f32 %v1284, %v1496
  %v1498 = vpop.f32.mrb[0].mxu0
  %v1499 = vadd.f32 %v1286, %v1498
  %v1500 = vpop.f32.mrb[0].mxu0
  %v1501 = vadd.f32 %v1288, %v1500
  %v1502 = vpop.f32.mrb[0].mxu0
  %v1503 = vadd.f32 %v1290, %v1502
  %1504 = vmatprep.mubr.bf16.mxu0 %v840
  %1505 = vmatmul.mubr.bf16.gmra.mrb[0].mxu0 %v839
  %v1506 = vpop.f32.mrb[0].mxu0
  %v1507 = vadd.f32 %v1294, %v1506
  %v1508 = vpop.f32.mrb[0].mxu0
  %v1509 = vadd.f32 %v1296, %v1508
  %v1510 = vpop.f32.mrb[0].mxu0
  %v1511 = vadd.f32 %v1298, %v1510
  %v1512 = vpop.f32.mrb[0].mxu0
  %v1513 = vadd.f32 %v1300, %v1512
  %1514 = vdwg.mxu0
  %v1547 = vunpack.c.l.b16 %v1056
  %v1548 = vunpack.c.h.b16 %v1056
  %v1549 = vunpack.c.l.b16 %v1057
  %v1550 = vunpack.c.h.b16 %v1057
  %v1551 = vunpack.c.l.b16 %v1058
  %v1552 = vunpack.c.h.b16 %v1058
  %v1553 = vunpack.c.l.b16 %v1059
  %v1554 = vunpack.c.h.b16 %v1059
  %v1555 = vunpack.c.l.b16 %v1060
  %v1556 = vunpack.c.h.b16 %v1060
  %v1557 = vunpack.c.l.b16 %v1061
  %v1558 = vunpack.c.h.b16 %v1061
  %v1559 = vunpack.c.l.b16 %v1062
  %v1560 = vunpack.c.h.b16 %v1062
  %v1561 = vunpack.c.l.b16 %v1063
  %v1562 = vunpack.c.h.b16 %v1063
  %v1563 = vunpack.c.l.b16 %v1064
  %v1564 = vunpack.c.h.b16 %v1064
  %v1565 = vunpack.c.l.b16 %v1065
  %v1566 = vunpack.c.h.b16 %v1065
  %v1567 = vunpack.c.l.b16 %v1066
  %v1568 = vunpack.c.h.b16 %v1066
  %v1569 = vunpack.c.l.b16 %v1067
  %v1570 = vunpack.c.h.b16 %v1067
  %v1571 = vunpack.c.l.b16 %v1068
  %v1572 = vunpack.c.h.b16 %v1068
  %v1573 = vunpack.c.l.b16 %v1069
  %v1574 = vunpack.c.h.b16 %v1069
  %v1575 = vunpack.c.l.b16 %v1070
  %v1576 = vunpack.c.h.b16 %v1070
  %v1577 = vunpack.c.l.b16 %v1071
  %v1578 = vunpack.c.h.b16 %v1071
  %v1579 = vunpack.c.l.b16 %v1072
  %v1580 = vunpack.c.h.b16 %v1072
  %v1581 = vunpack.c.l.b16 %v1073
  %v1582 = vunpack.c.h.b16 %v1073
  %v1583 = vunpack.c.l.b16 %v1074
  %v1584 = vunpack.c.h.b16 %v1074
  %v1585 = vunpack.c.l.b16 %v1075
  %v1586 = vunpack.c.h.b16 %v1075
  %v1587 = vunpack.c.l.b16 %v1076
  %v1588 = vunpack.c.h.b16 %v1076
  %v1589 = vunpack.c.l.b16 %v1077
  %v1590 = vunpack.c.h.b16 %v1077
  %v1591 = vunpack.c.l.b16 %v1078
  %v1592 = vunpack.c.h.b16 %v1078
  %v1593 = vunpack.c.l.b16 %v1079
  %v1594 = vunpack.c.h.b16 %v1079
  %v1595 = vunpack.c.l.b16 %v1080
  %v1596 = vunpack.c.h.b16 %v1080
  %v1597 = vunpack.c.l.b16 %v1081
  %v1598 = vunpack.c.h.b16 %v1081
  %v1599 = vunpack.c.l.b16 %v1082
  %v1600 = vunpack.c.h.b16 %v1082
  %v1601 = vunpack.c.l.b16 %v1083
  %v1602 = vunpack.c.h.b16 %v1083
  %v1603 = vunpack.c.l.b16 %v1084
  %v1604 = vunpack.c.h.b16 %v1084
  %v1605 = vunpack.c.l.b16 %v1085
  %v1606 = vunpack.c.h.b16 %v1085
  %v1607 = vunpack.c.l.b16 %v1086
  %v1608 = vunpack.c.h.b16 %v1086
  %v1609 = vunpack.c.l.b16 %v1087
  %v1610 = vunpack.c.h.b16 %v1087
  %v1611 = vpack.c.b16 %v1549, %v1547
  %v1612 = vpack.c.b16 %v1550, %v1548
  %v1613 = vpack.c.b16 %v1553, %v1551
  %v1614 = vpack.c.b16 %v1554, %v1552
  %v1615 = vpack.c.b16 %v1557, %v1555
  %v1616 = vpack.c.b16 %v1558, %v1556
  %v1617 = vpack.c.b16 %v1561, %v1559
  %v1618 = vpack.c.b16 %v1562, %v1560
  %v1619 = vpack.c.b16 %v1565, %v1563
  %v1620 = vpack.c.b16 %v1566, %v1564
  %v1621 = vpack.c.b16 %v1569, %v1567
  %v1622 = vpack.c.b16 %v1570, %v1568
  %v1623 = vpack.c.b16 %v1573, %v1571
  %v1624 = vpack.c.b16 %v1574, %v1572
  %v1625 = vpack.c.b16 %v1577, %v1575
  %v1626 = vpack.c.b16 %v1578, %v1576
  %v1627 = vpack.c.b16 %v1581, %v1579
  %v1628 = vpack.c.b16 %v1582, %v1580
  %v1629 = vpack.c.b16 %v1585, %v1583
  %v1630 = vpack.c.b16 %v1586, %v1584
  %v1631 = vpack.c.b16 %v1589, %v1587
  %v1632 = vpack.c.b16 %v1590, %v1588
  %v1633 = vpack.c.b16 %v1593, %v1591
  %v1634 = vpack.c.b16 %v1594, %v1592
  %v1635 = vpack.c.b16 %v1597, %v1595
  %v1636 = vpack.c.b16 %v1598, %v1596
  %v1637 = vpack.c.b16 %v1601, %v1599
  %v1638 = vpack.c.b16 %v1602, %v1600
  %v1639 = vpack.c.b16 %v1605, %v1603
  %v1640 = vpack.c.b16 %v1606, %v1604
  %v1641 = vpack.c.b16 %v1609, %v1607
  %v1642 = vpack.c.b16 %v1610, %v1608
  %1675 = vmatprep.subr.bf16.mxu0 %v1612
  %1676 = vmatpush1.bf16.msra.mxu0 %v1611
  %1677 = vmatprep.subr.bf16.mxu0 %v1614
  %1678 = vmatpush1.bf16.msra.mxu0 %v1613
  %1679 = vmatprep.subr.bf16.mxu0 %v1616
  %1680 = vmatpush1.bf16.msra.mxu0 %v1615
  %1681 = vmatprep.subr.bf16.mxu0 %v1618
  %1682 = vmatpush1.bf16.msra.mxu0 %v1617
  %1683 = vmatprep.subr.bf16.mxu0 %v1620
  %1684 = vmatpush1.bf16.msra.mxu0 %v1619
  %1685 = vmatprep.subr.bf16.mxu0 %v1622
  %1686 = vmatpush1.bf16.msra.mxu0 %v1621
  %1687 = vmatprep.subr.bf16.mxu0 %v1624
  %1688 = vmatpush1.bf16.msra.mxu0 %v1623
  %1689 = vmatprep.subr.bf16.mxu0 %v1626
  %1690 = vmatpush1.bf16.msra.mxu0 %v1625
  %1691 = vmatprep.subr.bf16.mxu0 %v1628
  %1692 = vmatpush1.bf16.msra.mxu0 %v1627
  %1693 = vmatprep.subr.bf16.mxu0 %v1630
  %1694 = vmatpush1.bf16.msra.mxu0 %v1629
  %1695 = vmatprep.subr.bf16.mxu0 %v1632
  %1696 = vmatpush1.bf16.msra.mxu0 %v1631
  %1697 = vmatprep.subr.bf16.mxu0 %v1634
  %1698 = vmatpush1.bf16.msra.mxu0 %v1633
  %1699 = vmatprep.subr.bf16.mxu0 %v1636
  %1700 = vmatpush1.bf16.msra.mxu0 %v1635
  %1701 = vmatprep.subr.bf16.mxu0 %v1638
  %1702 = vmatpush1.bf16.msra.mxu0 %v1637
  %1703 = vmatprep.subr.bf16.mxu0 %v1640
  %1704 = vmatpush1.bf16.msra.mxu0 %v1639
  %1705 = vmatprep.subr.bf16.mxu0 %v1642
  %1706 = vmatpush1.bf16.msra.mxu0 %v1641
  %1707 = vmatprep.mubr.bf16.mxu0 %v893
  %1708 = vmatmul.mubr.bf16.gmra.mrb[0].mxu0 %v881
  %v1709 = vpop.f32.mrb[0].mxu0
  %v1710 = vadd.f32 0.0, %v1709
  %v1711 = vpop.f32.mrb[0].mxu0
  %v1712 = vadd.f32 0.0, %v1711
  %v1713 = vpop.f32.mrb[0].mxu0
  %v1714 = vadd.f32 0.0, %v1713
  %v1715 = vpop.f32.mrb[0].mxu0
  %v1716 = vadd.f32 0.0, %v1715
  %1717 = vmatprep.mubr.bf16.mxu0 %v917
  %1718 = vmatmul.mubr.bf16.gmra.mrb[0].mxu0 %v905
  %v1719 = vpop.f32.mrb[0].mxu0
  %v1720 = vadd.f32 0.0, %v1719
  %v1721 = vpop.f32.mrb[0].mxu0
  %v1722 = vadd.f32 0.0, %v1721
  %v1723 = vpop.f32.mrb[0].mxu0
  %v1724 = vadd.f32 0.0, %v1723
  %v1725 = vpop.f32.mrb[0].mxu0
  %v1726 = vadd.f32 0.0, %v1725
  %1727 = vdwg.mxu0
  %v1728 = vadd.f32 %v1497, %v1710
  %v1729 = vadd.f32 %v1499, %v1712
  %v1730 = vadd.f32 %v1501, %v1714
  %v1731 = vadd.f32 %v1503, %v1716
  %v1732 = vadd.f32 %v1507, %v1720
  %v1733 = vadd.f32 %v1509, %v1722
  %v1734 = vadd.f32 %v1511, %v1724
  %v1735 = vadd.f32 %v1513, %v1726
  %v1737 = vlaneseq
  %v1738 = vshrl.u32 %v1737, 7
  %v1739 = vsub.s32 0, %v1738
  %v1740 = vrot.slane %v1088, %v1739
  %v1741 = vlaneseq
  %v1742 = vshrl.u32 %v1741, 7
  %v1743 = vsub.s32 1, %v1742
  %v1744 = vrot.slane %v1088, %v1743
  %v1747 = vadd.f32 %v1728, %v1740
  %v1748 = vadd.f32 %v1729, %v1744
  %v1749 = vadd.f32 %v1730, %v1740
  %v1750 = vadd.f32 %v1731, %v1744
  %v1751 = vadd.f32 %v1732, %v1740
  %v1752 = vadd.f32 %v1733, %v1744
  %v1753 = vadd.f32 %v1734, %v1740
  %v1754 = vadd.f32 %v1735, %v1744
  %v1755 = vmax.f32 %v1747, 0.0
  %v1756 = vmax.f32 %v1748, 0.0
  %v1757 = vmax.f32 %v1749, 0.0
  %v1758 = vmax.f32 %v1750, 0.0
  %v1759 = vmax.f32 %v1751, 0.0
  %v1760 = vmax.f32 %v1752, 0.0
  %v1761 = vmax.f32 %v1753, 0.0
  %v1762 = vmax.f32 %v1754, 0.0
  %1763 = vmatprep.subr.bf16.mxu0 %v1186
  %1764 = vmatpush1.bf16.msra.mxu0 %v1185
  %1765 = vmatprep.subr.bf16.mxu0 %v1188
  %1766 = vmatpush1.bf16.msra.mxu0 %v1187
  %1767 = vmatprep.subr.bf16.mxu0 %v1190
  %1768 = vmatpush1.bf16.msra.mxu0 %v1189
  %1769 = vmatprep.subr.bf16.mxu0 %v1192
  %1770 = vmatpush1.bf16.msra.mxu0 %v1191
  %1771 = vmatprep.subr.bf16.mxu0 %v1194
  %1772 = vmatpush1.bf16.msra.mxu0 %v1193
  %1773 = vmatprep.subr.bf16.mxu0 %v1196
  %1774 = vmatpush1.bf16.msra.mxu0 %v1195
  %1775 = vmatprep.subr.bf16.mxu0 %v1198
  %1776 = vmatpush1.bf16.msra.mxu0 %v1197
  %1777 = vmatprep.subr.bf16.mxu0 %v1200
  %1778 = vmatpush1.bf16.msra.mxu0 %v1199
  %1779 = vmatprep.subr.bf16.mxu0 %v1202
  %1780 = vmatpush1.bf16.msra.mxu0 %v1201
  %1781 = vmatprep.subr.bf16.mxu0 %v1204
  %1782 = vmatpush1.bf16.msra.mxu0 %v1203
  %1783 = vmatprep.subr.bf16.mxu0 %v1206
  %1784 = vmatpush1.bf16.msra.mxu0 %v1205
  %1785 = vmatprep.subr.bf16.mxu0 %v1208
  %1786 = vmatpush1.bf16.msra.mxu0 %v1207
  %1787 = vmatprep.subr.bf16.mxu0 %v1210
  %1788 = vmatpush1.bf16.msra.mxu0 %v1209
  %1789 = vmatprep.subr.bf16.mxu0 %v1212
  %1790 = vmatpush1.bf16.msra.mxu0 %v1211
  %1791 = vmatprep.subr.bf16.mxu0 %v1214
  %1792 = vmatpush1.bf16.msra.mxu0 %v1213
  %1793 = vmatprep.subr.bf16.mxu0 %v1216
  %1794 = vmatpush1.bf16.msra.mxu0 %v1215
  %1795 = vmatprep.mubr.bf16.mxu0 %v893
  %1796 = vmatmul.mubr.bf16.gmra.mrb[0].mxu0 %v881
  %v1797 = vpop.f32.mrb[0].mxu0
  %v1798 = vadd.f32 0.0, %v1797
  %v1799 = vpop.f32.mrb[0].mxu0
  %v1800 = vadd.f32 0.0, %v1799
  %v1801 = vpop.f32.mrb[0].mxu0
  %v1802 = vadd.f32 0.0, %v1801
  %v1803 = vpop.f32.mrb[0].mxu0
  %v1804 = vadd.f32 0.0, %v1803
  %1805 = vmatprep.mubr.bf16.mxu0 %v917
  %1806 = vmatmul.mubr.bf16.gmra.mrb[0].mxu0 %v905
  %v1807 = vpop.f32.mrb[0].mxu0
  %v1808 = vadd.f32 0.0, %v1807
  %v1809 = vpop.f32.mrb[0].mxu0
  %v1810 = vadd.f32 0.0, %v1809
  %v1811 = vpop.f32.mrb[0].mxu0
  %v1812 = vadd.f32 0.0, %v1811
  %v1813 = vpop.f32.mrb[0].mxu0
  %v1814 = vadd.f32 0.0, %v1813
  %1815 = vdwg.mxu0
  %1816 = vmatprep.subr.bf16.mxu0 %v1399
  %1817 = vmatpush1.bf16.msra.mxu0 %v1398
  %1818 = vmatprep.subr.bf16.mxu0 %v1401
  %1819 = vmatpush1.bf16.msra.mxu0 %v1400
  %1820 = vmatprep.subr.bf16.mxu0 %v1403
  %1821 = vmatpush1.bf16.msra.mxu0 %v1402
  %1822 = vmatprep.subr.bf16.mxu0 %v1405
  %1823 = vmatpush1.bf16.msra.mxu0 %v1404
  %1824 = vmatprep.subr.bf16.mxu0 %v1407
  %1825 = vmatpush1.bf16.msra.mxu0 %v1406
  %1826 = vmatprep.subr.bf16.mxu0 %v1409
  %1827 = vmatpush1.bf16.msra.mxu0 %v1408
  %1828 = vmatprep.subr.bf16.mxu0 %v1411
  %1829 = vmatpush1.bf16.msra.mxu0 %v1410
  %1830 = vmatprep.subr.bf16.mxu0 %v1413
  %1831 = vmatpush1.bf16.msra.mxu0 %v1412
  %1832 = vmatprep.subr.bf16.mxu0 %v1415
  %1833 = vmatpush1.bf16.msra.mxu0 %v1414
  %1834 = vmatprep.subr.bf16.mxu0 %v1417
  %1835 = vmatpush1.bf16.msra.mxu0 %v1416
  %1836 = vmatprep.subr.bf16.mxu0 %v1419
  %1837 = vmatpush1.bf16.msra.mxu0 %v1418
  %1838 = vmatprep.subr.bf16.mxu0 %v1421
  %1839 = vmatpush1.bf16.msra.mxu0 %v1420
  %1840 = vmatprep.subr.bf16.mxu0 %v1423
  %1841 = vmatpush1.bf16.msra.mxu0 %v1422
  %1842 = vmatprep.subr.bf16.mxu0 %v1425
  %1843 = vmatpush1.bf16.msra.mxu0 %v1424
  %1844 = vmatprep.subr.bf16.mxu0 %v1427
  %1845 = vmatpush1.bf16.msra.mxu0 %v1426
  %1846 = vmatprep.subr.bf16.mxu0 %v1429
  %1847 = vmatpush1.bf16.msra.mxu0 %v1428
  %1848 = vmatprep.mubr.bf16.mxu0 %v850
  %1849 = vmatmul.mubr.bf16.gmra.mrb[0].mxu0 %v849
  %v1850 = vpop.f32.mrb[0].mxu0
  %v1851 = vadd.f32 %v1798, %v1850
  %v1852 = vpop.f32.mrb[0].mxu0
  %v1853 = vadd.f32 %v1800, %v1852
  %v1854 = vpop.f32.mrb[0].mxu0
  %v1855 = vadd.f32 %v1802, %v1854
  %v1856 = vpop.f32.mrb[0].mxu0
  %v1857 = vadd.f32 %v1804, %v1856
  %1858 = vmatprep.mubr.bf16.mxu0 %v852
  %1859 = vmatmul.mubr.bf16.gmra.mrb[0].mxu0 %v851
  %v1860 = vpop.f32.mrb[0].mxu0
  %v1861 = vadd.f32 %v1808, %v1860
  %v1862 = vpop.f32.mrb[0].mxu0
  %v1863 = vadd.f32 %v1810, %v1862
  %v1864 = vpop.f32.mrb[0].mxu0
  %v1865 = vadd.f32 %v1812, %v1864
  %v1866 = vpop.f32.mrb[0].mxu0
  %v1867 = vadd.f32 %v1814, %v1866
  %1868 = vdwg.mxu0
  %1869 = vmatprep.subr.bf16.mxu0 %v1612
  %1870 = vmatpush1.bf16.msra.mxu0 %v1611
  %1871 = vmatprep.subr.bf16.mxu0 %v1614
  %1872 = vmatpush1.bf16.msra.mxu0 %v1613
  %1873 = vmatprep.subr.bf16.mxu0 %v1616
  %1874 = vmatpush1.bf16.msra.mxu0 %v1615
  %1875 = vmatprep.subr.bf16.mxu0 %v1618
  %1876 = vmatpush1.bf16.msra.mxu0 %v1617
  %1877 = vmatprep.subr.bf16.mxu0 %v1620
  %1878 = vmatpush1.bf16.msra.mxu0 %v1619
  %1879 = vmatprep.subr.bf16.mxu0 %v1622
  %1880 = vmatpush1.bf16.msra.mxu0 %v1621
  %1881 = vmatprep.subr.bf16.mxu0 %v1624
  %1882 = vmatpush1.bf16.msra.mxu0 %v1623
  %1883 = vmatprep.subr.bf16.mxu0 %v1626
  %1884 = vmatpush1.bf16.msra.mxu0 %v1625
  %1885 = vmatprep.subr.bf16.mxu0 %v1628
  %1886 = vmatpush1.bf16.msra.mxu0 %v1627
  %1887 = vmatprep.subr.bf16.mxu0 %v1630
  %1888 = vmatpush1.bf16.msra.mxu0 %v1629
  %1889 = vmatprep.subr.bf16.mxu0 %v1632
  %1890 = vmatpush1.bf16.msra.mxu0 %v1631
  %1891 = vmatprep.subr.bf16.mxu0 %v1634
  %1892 = vmatpush1.bf16.msra.mxu0 %v1633
  %1893 = vmatprep.subr.bf16.mxu0 %v1636
  %1894 = vmatpush1.bf16.msra.mxu0 %v1635
  %1895 = vmatprep.subr.bf16.mxu0 %v1638
  %1896 = vmatpush1.bf16.msra.mxu0 %v1637
  %1897 = vmatprep.subr.bf16.mxu0 %v1640
  %1898 = vmatpush1.bf16.msra.mxu0 %v1639
  %1899 = vmatprep.subr.bf16.mxu0 %v1642
  %1900 = vmatpush1.bf16.msra.mxu0 %v1641
  %1901 = vmatprep.mubr.bf16.mxu0 %v961
  %1902 = vmatmul.mubr.bf16.gmra.mrb[0].mxu0 %v949
  %v1903 = vpop.f32.mrb[0].mxu0
  %v1904 = vadd.f32 0.0, %v1903
  %v1905 = vpop.f32.mrb[0].mxu0
  %v1906 = vadd.f32 0.0, %v1905
  %v1907 = vpop.f32.mrb[0].mxu0
  %v1908 = vadd.f32 0.0, %v1907
  %v1909 = vpop.f32.mrb[0].mxu0
  %v1910 = vadd.f32 0.0, %v1909
  %1911 = vmatprep.mubr.bf16.mxu0 %v985
  %1912 = vmatmul.mubr.bf16.gmra.mrb[0].mxu0 %v973
  %v1913 = vpop.f32.mrb[0].mxu0
  %v1914 = vadd.f32 0.0, %v1913
  %v1915 = vpop.f32.mrb[0].mxu0
  %v1916 = vadd.f32 0.0, %v1915
  %v1917 = vpop.f32.mrb[0].mxu0
  %v1918 = vadd.f32 0.0, %v1917
  %v1919 = vpop.f32.mrb[0].mxu0
  %v1920 = vadd.f32 0.0, %v1919
  %1921 = vdwg.mxu0
  %v1922 = vadd.f32 %v1851, %v1904
  %v1923 = vadd.f32 %v1853, %v1906
  %v1924 = vadd.f32 %v1855, %v1908
  %v1925 = vadd.f32 %v1857, %v1910
  %v1926 = vadd.f32 %v1861, %v1914
  %v1927 = vadd.f32 %v1863, %v1916
  %v1928 = vadd.f32 %v1865, %v1918
  %v1929 = vadd.f32 %v1867, %v1920
  %v1930 = vadd.f32 %v1922, %v1740
  %v1931 = vadd.f32 %v1923, %v1744
  %v1932 = vadd.f32 %v1924, %v1740
  %v1933 = vadd.f32 %v1925, %v1744
  %v1934 = vadd.f32 %v1926, %v1740
  %v1935 = vadd.f32 %v1927, %v1744
  %v1936 = vadd.f32 %v1928, %v1740
  %v1937 = vadd.f32 %v1929, %v1744
  %v1938 = vmax.f32 %v1930, 0.0
  %v1939 = vmax.f32 %v1931, 0.0
  %v1940 = vmax.f32 %v1932, 0.0
  %v1941 = vmax.f32 %v1933, 0.0
  %v1942 = vmax.f32 %v1934, 0.0
  %v1943 = vmax.f32 %v1935, 0.0
  %v1944 = vmax.f32 %v1936, 0.0
  %v1945 = vmax.f32 %v1937, 0.0
  %1946 = vst [vmem:[%s5] sm:$0xff] %v1755
  %1947 = vst [vmem:[%s5 + $0x8] sm:$0xff] %v1756
  %1948 = vst [vmem:[%s5 + $0x20] sm:$0xff] %v1757
  %1949 = vst [vmem:[%s5 + $0x28] sm:$0xff] %v1758
  %1950 = vst [vmem:[%s5 + $0x40] sm:$0xff] %v1759
  %1951 = vst [vmem:[%s5 + $0x48] sm:$0xff] %v1760
  %1952 = vst [vmem:[%s5 + $0x60] sm:$0xff] %v1761
  %1953 = vst [vmem:[%s5 + $0x68] sm:$0xff] %v1762
  %1954 = vst [vmem:[%s5 + $0x10] sm:$0xff] %v1938
  %1955 = vst [vmem:[%s5 + $0x18] sm:$0xff] %v1939
  %1956 = vst [vmem:[%s5 + $0x30] sm:$0xff] %v1940
  %1957 = vst [vmem:[%s5 + $0x38] sm:$0xff] %v1941
  %1958 = vst [vmem:[%s5 + $0x50] sm:$0xff] %v1942
  %1959 = vst [vmem:[%s5 + $0x58] sm:$0xff] %v1943
  %1960 = vst [vmem:[%s5 + $0x70] sm:$0xff] %v1944
  %1961 = vst [vmem:[%s5 + $0x78] sm:$0xff] %v1945
  // Predicated region
  $region22: #{up_forward.1} parent=0 // pred_check
    _
  $region23: #{up_forward.1} parent=0 // pred_check_branch
    %1963 = sbr.rel (0) target = $region25
  $region24: #{up_forward.1} parent=0 // pred_region
    _
  $region25: #{up_forward.1} parent=0 // pred_fallthru
    _
  // Predicated region
  $region26: #{up_forward.1} parent=0 // pred_check
    _
  $region27: #{up_forward.1} parent=0 // pred_check_branch
    %1965 = sbr.rel (0) target = $region29
  $region28: #{up_forward.1} parent=0 // pred_region
    _
  $region29: #{up_forward.1} parent=0 // pred_fallthru
    _

</llo_original>
